<compile_context>
chip_gen: v7x
topology: tpu7x:2x2x1
jax: 0.10.0
libtpu: 0.0.40
codegen_flags: <defaults>
</compile_context>

<pallas_src>
import functools

import jax
import jax.numpy as jnp
from jax.experimental import pallas as pl
from jax.experimental.pallas import tpu as pltpu


def _mlp_block_kernel(num_hidden_layers, x_ref, *refs):
    # refs = [wT0, b0, wT1, b1, ..., wT_final, b_final, o_ref]
    # x_ref / o_ref blocks are (tile_m, D) in natural row-major layout.
    # Weights are pre-transposed (in, out); hidden-layer outputs carry the
    # un-divided hardswish (x * relu6(x+3)); the 1/6 is folded into the next
    # layer's weights by the wrapper.
    o_ref = refs[-1]
    params = refs[:-1]

    xf = x_ref[...].astype(jnp.float32)   # no-op for f32 inputs; v5e-safe upcast for bf16
    y = xf
    for li in range(num_hidden_layers):
        wt = params[2 * li][...]          # (in, out), f32, 1/6-folded where needed
        b = params[2 * li + 1][...]       # (1, out),  f32
        y = jnp.dot(y, wt, preferred_element_type=jnp.float32) + b
        y = y * jnp.clip(y + 3.0, 0.0, 6.0)   # 6 * hardswish(y); /6 folded into next W
    wt = params[-2][...]
    b = params[-1][...]
    y = jnp.dot(y, wt, preferred_element_type=jnp.float32) + b
    o_ref[...] = (y + xf).astype(o_ref.dtype)


def _choose_tiling(m, *, max_tile=4096, min_steps=2):
    """Pick (tile_m, m_pad, n_steps): sublane-aligned tile dividing the padded
    row count, with an even grid for v7x's two TensorCores / megacore."""
    m_al = pl.cdiv(m, 8) * 8
    n_steps = max(min_steps, pl.cdiv(m_al, max_tile))
    if n_steps % 2:
        n_steps += 1
    tile_m = pl.cdiv(pl.cdiv(m_al, n_steps), 8) * 8
    m_pad = tile_m * n_steps
    return tile_m, m_pad, n_steps


def mlp_block_forward(x, weights, biases, *, max_tile=4096):
    """x: (..., D).  weights[i]: (out_i, in_i), biases[i]: (out_i,) in PyTorch
    Linear convention.  Returns array with same shape/dtype as x."""
    orig_shape = x.shape
    orig_dtype = x.dtype
    d_in = orig_shape[-1]

    # Free leading-dim collapse (row-major bitcast, no data movement).
    x2d = x.reshape(-1, d_in)
    m = x2d.shape[0]
    tile_m, m_pad, n_steps = _choose_tiling(m, max_tile=max_tile)
    if m_pad != m:
        x2d = jnp.pad(x2d, ((0, m_pad - m), (0, 0)))

    num_hidden = len(weights) - 1  # last entry is the final layer

    # One-time param prep (hoisted out of the kernel):
    #   * transpose (out,in) -> (in,out) so the kernel does x @ W_T directly
    #   * fold the 1/6 Hardswish scale of the *previous* activation into every
    #     layer after the first
    #   * biases as (1, out) rows (broadcast along sublanes with no reshape)
    wts, brows = [], []
    for j, (w, b) in enumerate(zip(weights, biases)):
        wt = jnp.asarray(w, jnp.float32).T
        if j > 0:
            wt = wt * (1.0 / 6.0)
        wts.append(wt)
        brows.append(jnp.asarray(b, jnp.float32).reshape(1, -1))

    in_specs = [pl.BlockSpec((tile_m, d_in), lambda i: (i, 0))]
    args = [x2d]
    for wt, b in zip(wts, brows):
        # Grid-invariant params: full-array blocks, constant index.
        in_specs.append(pl.BlockSpec(wt.shape, lambda i: (0, 0)))
        in_specs.append(pl.BlockSpec(b.shape, lambda i: (0, 0)))
        args.append(wt)
        args.append(b)

    out2d = pl.pallas_call(
        functools.partial(_mlp_block_kernel, num_hidden),
        out_shape=jax.ShapeDtypeStruct((m_pad, d_in), orig_dtype),
        grid_spec=pltpu.PrefetchScalarGridSpec(
            num_scalar_prefetch=0,
            grid=(n_steps,),
            in_specs=in_specs,
            out_specs=pl.BlockSpec((tile_m, d_in), lambda i: (i, 0)),
        ),
        compiler_params=pltpu.CompilerParams(
            # Row tiles are independent -> megacore / v7x 2-TC sharding.
            dimension_semantics=("parallel",),
            # Tiles are small (a (4096,16) f32 block is 256 KiB); explicit
            # limit keeps v7x's 64 MiB VMEM safe if dims are scaled up.
            vmem_limit_bytes=32 * 1024 * 1024,
        ),
    )(*args)

    if m_pad != m:
        out2d = out2d[:m]
    return out2d.reshape(orig_shape)


def _hardswish_ref(y):
    # torch.nn.Hardswish: x * relu6(x + 3) / 6
    return y * jnp.clip(y + 3.0, 0.0, 6.0) * (1.0 / 6.0)


def init_params(key, input_shape, squeeze_dims):
    """Deterministic init mimicking torch.nn.Linear (uniform +/-1/sqrt(fan_in))."""
    dims_in = [input_shape] + list(squeeze_dims)
    dims_out = list(squeeze_dims) + [input_shape]
    weights, biases = [], []
    for din, dout in zip(dims_in, dims_out):
        key, kw, kb = jax.random.split(key, 3)
        bound = 1.0 / (din ** 0.5)
        weights.append(jax.random.uniform(kw, (dout, din), jnp.float32,
                                          -bound, bound))
        biases.append(jax.random.uniform(kb, (dout,), jnp.float32,
                                         -bound, bound))
    return weights, biases


def reference_forward(x, weights, biases):
    y = x
    for w, b in zip(weights[:-1], biases[:-1]):
        y = y @ w.T + b
        y = _hardswish_ref(y)
    y = y @ weights[-1].T + biases[-1]
    return y + x


if __name__ == "__main__":
    key = jax.random.PRNGKey(0)

    # [N, T, V, C, D] with D = input_shape (axis the Linears act on).
    # M = N*T*V*C = 1280 -> tile_m = 640, grid = 2 (even, zero padding).
    N, T, V, C = 2, 8, 16, 5
    input_shape = 16
    squeeze_dims = [32, 24]

    k_x, k_p, k_a = jax.random.split(key, 3)
    x = jax.random.normal(k_x, (N, T, V, C, input_shape), jnp.float32)
    weights, biases = init_params(k_p, input_shape, squeeze_dims)
    # Registered buffer A (unused in forward) -- created for parity only.
    A = jax.random.normal(k_a, (V, V), jnp.float32)
    del A

    out = mlp_block_forward(x, weights, biases)
    out = jax.block_until_ready(out)

    ref = reference_forward(x, weights, biases)
    assert out.shape == x.shape and out.dtype == x.dtype
    assert jnp.allclose(out, ref, atol=1e-4, rtol=1e-4), "mismatch vs reference"

    print("KERNEL_OK")
</pallas_src>

<mosaic_0001>
module attributes {stable_mosaic.version = 11 : i64} {
  func.func @_mlp_block_kernel(%arg0: i32, %arg1: memref<640x16xf32, #tpu.memory_space<vmem>>, %arg2: memref<16x32xf32, #tpu.memory_space<vmem>>, %arg3: memref<1x32xf32, #tpu.memory_space<vmem>>, %arg4: memref<32x24xf32, #tpu.memory_space<vmem>>, %arg5: memref<1x24xf32, #tpu.memory_space<vmem>>, %arg6: memref<24x16xf32, #tpu.memory_space<vmem>>, %arg7: memref<1x16xf32, #tpu.memory_space<vmem>>, %arg8: memref<640x16xf32, #tpu.memory_space<vmem>>) attributes {dimension_semantics = [#tpu.dimension_semantics<parallel>], iteration_bounds = array<i64: 2>, scalar_prefetch = 0 : i64, scratch_operands = 0 : i64, tpu.core_type = #tpu.core_type<tc>, window_params = [{transform_indices = @transform_0, window_bounds = array<i64: 640, 16>}, {pipeline_mode = #tpu.pipeline_mode<synchronous>, transform_indices = @transform_1, window_bounds = array<i64: 16, 32>}, {pipeline_mode = #tpu.pipeline_mode<synchronous>, transform_indices = @transform_2, window_bounds = array<i64: 1, 32>}, {pipeline_mode = #tpu.pipeline_mode<synchronous>, transform_indices = @transform_3, window_bounds = array<i64: 32, 24>}, {pipeline_mode = #tpu.pipeline_mode<synchronous>, transform_indices = @transform_4, window_bounds = array<i64: 1, 24>}, {pipeline_mode = #tpu.pipeline_mode<synchronous>, transform_indices = @transform_5, window_bounds = array<i64: 24, 16>}, {pipeline_mode = #tpu.pipeline_mode<synchronous>, transform_indices = @transform_6, window_bounds = array<i64: 1, 16>}, {transform_indices = @transform_7, window_bounds = array<i64: 640, 16>}]} {
    %c0 = arith.constant 0 : index
    %c0_0 = arith.constant 0 : index
    %0 = vector.load %arg1[%c0, %c0_0] : memref<640x16xf32, #tpu.memory_space<vmem>>, vector<640x16xf32>
    %c0_1 = arith.constant 0 : index
    %c0_2 = arith.constant 0 : index
    %1 = vector.load %arg2[%c0_1, %c0_2] : memref<16x32xf32, #tpu.memory_space<vmem>>, vector<16x32xf32>
    %c0_3 = arith.constant 0 : index
    %c0_4 = arith.constant 0 : index
    %2 = vector.load %arg3[%c0_3, %c0_4] : memref<1x32xf32, #tpu.memory_space<vmem>>, vector<1x32xf32>
    %cst = arith.constant dense<0.000000e+00> : vector<640x32xf32>
    %3 = tpu.matmul %0, %1, %cst {dimension_numbers = #tpu.dot_dimension_numbers<[1], [0], [0], [1], [0, 0, 1, 1], [], []>} : vector<640x16xf32>, vector<16x32xf32>, vector<640x32xf32> -> vector<640x32xf32>
    %4 = vector.broadcast %2 : vector<1x32xf32> to vector<640x32xf32>
    %5 = arith.addf %3, %4 : vector<640x32xf32>
    %cst_5 = arith.constant 3.000000e+00 : f32
    %6 = vector.broadcast %cst_5 : f32 to vector<640x32xf32>
    %7 = arith.addf %5, %6 : vector<640x32xf32>
    %cst_6 = arith.constant 0.000000e+00 : f32
    %cst_7 = arith.constant 6.000000e+00 : f32
    %8 = vector.broadcast %cst_6 : f32 to vector<640x32xf32>
    %9 = arith.maximumf %8, %7 : vector<640x32xf32>
    %10 = vector.broadcast %cst_7 : f32 to vector<640x32xf32>
    %11 = arith.minimumf %10, %9 : vector<640x32xf32>
    %12 = arith.mulf %5, %11 : vector<640x32xf32>
    %c0_8 = arith.constant 0 : index
    %c0_9 = arith.constant 0 : index
    %13 = vector.load %arg4[%c0_8, %c0_9] : memref<32x24xf32, #tpu.memory_space<vmem>>, vector<32x24xf32>
    %c0_10 = arith.constant 0 : index
    %c0_11 = arith.constant 0 : index
    %14 = vector.load %arg5[%c0_10, %c0_11] : memref<1x24xf32, #tpu.memory_space<vmem>>, vector<1x24xf32>
    %cst_12 = arith.constant dense<0.000000e+00> : vector<640x24xf32>
    %15 = tpu.matmul %12, %13, %cst_12 {dimension_numbers = #tpu.dot_dimension_numbers<[1], [0], [0], [1], [0, 0, 1, 1], [], []>} : vector<640x32xf32>, vector<32x24xf32>, vector<640x24xf32> -> vector<640x24xf32>
    %16 = vector.broadcast %14 : vector<1x24xf32> to vector<640x24xf32>
    %17 = arith.addf %15, %16 : vector<640x24xf32>
    %cst_13 = arith.constant 3.000000e+00 : f32
    %18 = vector.broadcast %cst_13 : f32 to vector<640x24xf32>
    %19 = arith.addf %17, %18 : vector<640x24xf32>
    %cst_14 = arith.constant 0.000000e+00 : f32
    %cst_15 = arith.constant 6.000000e+00 : f32
    %20 = vector.broadcast %cst_14 : f32 to vector<640x24xf32>
    %21 = arith.maximumf %20, %19 : vector<640x24xf32>
    %22 = vector.broadcast %cst_15 : f32 to vector<640x24xf32>
    %23 = arith.minimumf %22, %21 : vector<640x24xf32>
    %24 = arith.mulf %17, %23 : vector<640x24xf32>
    %c0_16 = arith.constant 0 : index
    %c0_17 = arith.constant 0 : index
    %25 = vector.load %arg6[%c0_16, %c0_17] : memref<24x16xf32, #tpu.memory_space<vmem>>, vector<24x16xf32>
    %c0_18 = arith.constant 0 : index
    %c0_19 = arith.constant 0 : index
    %26 = vector.load %arg7[%c0_18, %c0_19] : memref<1x16xf32, #tpu.memory_space<vmem>>, vector<1x16xf32>
    %cst_20 = arith.constant dense<0.000000e+00> : vector<640x16xf32>
    %27 = tpu.matmul %24, %25, %cst_20 {dimension_numbers = #tpu.dot_dimension_numbers<[1], [0], [0], [1], [0, 0, 1, 1], [], []>} : vector<640x24xf32>, vector<24x16xf32>, vector<640x16xf32> -> vector<640x16xf32>
    %28 = vector.broadcast %26 : vector<1x16xf32> to vector<640x16xf32>
    %29 = arith.addf %27, %28 : vector<640x16xf32>
    %30 = arith.addf %29, %0 : vector<640x16xf32>
    %c0_21 = arith.constant 0 : index
    %c0_22 = arith.constant 0 : index
    %31 = vector.load %arg8[%c0_21, %c0_22] : memref<640x16xf32, #tpu.memory_space<vmem>>, vector<640x16xf32>
    tpu.vector_store %arg8[%c0_21, %c0_22], %30 {strides = array<i32>} : memref<640x16xf32, #tpu.memory_space<vmem>>, vector<640x16xf32>,
    return
  }
  func.func @transform_0(%arg0: i32) -> (i32, i32) {
    %c0_i32 = arith.constant 0 : i32
    %c0_i32_0 = arith.constant 0 : i32
    return %arg0, %c0_i32 : i32, i32
  }
  func.func @transform_1(%arg0: i32) -> (i32, i32) {
    %c0_i32 = arith.constant 0 : i32
    %c0_i32_0 = arith.constant 0 : i32
    %c0_i32_1 = arith.constant 0 : i32
    return %c0_i32, %c0_i32_0 : i32, i32
  }
  func.func @transform_2(%arg0: i32) -> (i32, i32) {
    %c0_i32 = arith.constant 0 : i32
    %c0_i32_0 = arith.constant 0 : i32
    %c0_i32_1 = arith.constant 0 : i32
    return %c0_i32, %c0_i32_0 : i32, i32
  }
  func.func @transform_3(%arg0: i32) -> (i32, i32) {
    %c0_i32 = arith.constant 0 : i32
    %c0_i32_0 = arith.constant 0 : i32
    %c0_i32_1 = arith.constant 0 : i32
    return %c0_i32, %c0_i32_0 : i32, i32
  }
  func.func @transform_4(%arg0: i32) -> (i32, i32) {
    %c0_i32 = arith.constant 0 : i32
    %c0_i32_0 = arith.constant 0 : i32
    %c0_i32_1 = arith.constant 0 : i32
    return %c0_i32, %c0_i32_0 : i32, i32
  }
  func.func @transform_5(%arg0: i32) -> (i32, i32) {
    %c0_i32 = arith.constant 0 : i32
    %c0_i32_0 = arith.constant 0 : i32
    %c0_i32_1 = arith.constant 0 : i32
    return %c0_i32, %c0_i32_0 : i32, i32
  }
  func.func @transform_6(%arg0: i32) -> (i32, i32) {
    %c0_i32 = arith.constant 0 : i32
    %c0_i32_0 = arith.constant 0 : i32
    %c0_i32_1 = arith.constant 0 : i32
    return %c0_i32, %c0_i32_0 : i32, i32
  }
  func.func @transform_7(%arg0: i32) -> (i32, i32) {
    %c0_i32 = arith.constant 0 : i32
    %c0_i32_0 = arith.constant 0 : i32
    return %arg0, %c0_i32 : i32, i32
  }
}

</mosaic_0001>

<llo_original>
// kernel: tpu_custom_call.1
$region0: #{tpu_custom_call.1}
  #allocation0 [shape = 'u32[]', space=smem, size = 0x4, offset = 0x4, fixed_abs, tag = 'smem constant byte address 0x4 - core index']
  #allocation1 [shape = 'u32[144,128]{1,0:T(1,128)}', space=vmem, size = 0x12000, scoped, tag = 'internal scratch']
  %s0 = inlined_call_operand.vmem [shape: f32[1280,16], index: 0, kind: input, shape index: {}]
  %s1 = inlined_call_operand.vmem [shape: f32[16,32], index: 1, kind: input, shape index: {}]
  %s2 = inlined_call_operand.vmem [shape: f32[1,32], index: 2, kind: input, shape index: {}]
  %s3 = inlined_call_operand.vmem [shape: f32[32,24], index: 3, kind: input, shape index: {}]
  %s4 = inlined_call_operand.vmem [shape: f32[1,24], index: 4, kind: input, shape index: {}]
  %s5 = inlined_call_operand.vmem [shape: f32[24,16], index: 5, kind: input, shape index: {}]
  %s6 = inlined_call_operand.vmem [shape: f32[1,16], index: 6, kind: input, shape index: {}]
  %s7 = inlined_call_operand.vmem [shape: f32[1280,16], index: 7, kind: output, shape index: {}]
  %s8 = sld [smem:[#allocation0]]
  $region61: #{tpu_custom_call.1} parent=0
    _
  %s10 = ssub.s32 1, %s8
  %s11 = scalar_select 0, %s10, %s8
  loop: start=0, step=1, limit=4
  $region2: #{tpu_custom_call.1} parent=0 // loop_pre_header
    _
  $region3: #{tpu_custom_call.1} parent=0 // loop_header
    %s13 = sphi 0, %s17
    %p14 = scmp.ge.s32.totalorder %s13, 4
    %s23 = sphi 0, %s25
    %s26 = sphi 0, %s23
    %s27 = sphi 0, %s26
    %s43 = sphi 0, %s27
    %s47 = sphi 0, %s47
    %s49 = sphi 0, %s47
    %s50 = sphi 0, %s49
    %s64 = sphi 0, %s50
    %s68 = sphi 0, %s68
    %s70 = sphi 0, %s68
    %s71 = sphi 0, %s70
    %s85 = sphi 0, %s71
    %s89 = sphi 0, %s89
    %s91 = sphi 0, %s89
    %s92 = sphi 0, %s91
    %s106 = sphi 0, %s92
    %s110 = sphi 0, %s110
    %s112 = sphi 0, %s110
    %s113 = sphi 0, %s112
    %s127 = sphi 0, %s113
    %s131 = sphi 0, %s131
    %s133 = sphi 0, %s131
    %s134 = sphi 0, %s133
    %s148 = sphi 0, %s134
    %s152 = sphi 0, %s152
    %s154 = sphi 0, %s152
    %s155 = sphi 0, %s154
    %s169 = sphi 0, %s155
    %s175 = sphi 0, %s177
    %s178 = sphi 0, %s175
    %s179 = sphi 0, %s178
    %s195 = sphi 0, %s179
  $region4: #{tpu_custom_call.1} parent=0 // loop_header_branch
    %16 = sbr.rel (%p14) target = $region8
  $region5: #{tpu_custom_call.1} parent=0 // loop_body
    %s18 = ssub.s32 %s13, 1
    %s19 = ssub.s32 %s13, 2
    %s20 = sadd.s32 %s13, 1
    %s21 = ssub.s32 %s13, %s20
    %p22 = scmp.eq.s32.totalorder %s21, 0
    %s24 = sadd.s32 %s23, 1
    %s25 = scalar_select %p22, %s23, %s24
    %p28 = pneg %p22
    %p29 = scmp.eq.s32.totalorder %s13, 1
    %p30 = por %p28, %p29
    %p31 = scmp.ne.s32.totalorder %s23, %s26
    %p32 = scmp.eq.s32.totalorder %s13, 0
    %p33 = por %p31, %p32
    %p34 = scmp.ne.s32.totalorder %s23, %s26
    %p35 = scmp.eq.s32.totalorder %s18, 1
    %p36 = por %p34, %p35
    %p37 = scmp.ne.s32.totalorder %s26, %s27
    %p38 = scmp.eq.s32.totalorder %s18, 0
    %p39 = por %p37, %p38
    %p40 = scmp.ne.s32.totalorder %s26, %s27
    %p41 = scmp.eq.s32.totalorder %s19, 1
    %p42 = por %p40, %p41
    %p44 = scmp.ne.s32.totalorder %s27, %s43
    %p45 = scmp.eq.s32.totalorder %s19, 0
    %p46 = por %p44, %p45
    %s48 = sadd.s32 %s47, 1
    %p51 = scmp.eq.s32.totalorder %s13, 1
    %p52 = scmp.ne.s32.totalorder %s47, %s49
    %p53 = scmp.eq.s32.totalorder %s13, 0
    %p54 = por %p52, %p53
    %p55 = scmp.ne.s32.totalorder %s47, %s49
    %p56 = scmp.eq.s32.totalorder %s18, 1
    %p57 = por %p55, %p56
    %p58 = scmp.ne.s32.totalorder %s49, %s50
    %p59 = scmp.eq.s32.totalorder %s18, 0
    %p60 = por %p58, %p59
    %p61 = scmp.ne.s32.totalorder %s49, %s50
    %p62 = scmp.eq.s32.totalorder %s19, 1
    %p63 = por %p61, %p62
    %p65 = scmp.ne.s32.totalorder %s50, %s64
    %p66 = scmp.eq.s32.totalorder %s19, 0
    %p67 = por %p65, %p66
    %s69 = sadd.s32 %s68, 1
    %p72 = scmp.eq.s32.totalorder %s13, 1
    %p73 = scmp.ne.s32.totalorder %s68, %s70
    %p74 = scmp.eq.s32.totalorder %s13, 0
    %p75 = por %p73, %p74
    %p76 = scmp.ne.s32.totalorder %s68, %s70
    %p77 = scmp.eq.s32.totalorder %s18, 1
    %p78 = por %p76, %p77
    %p79 = scmp.ne.s32.totalorder %s70, %s71
    %p80 = scmp.eq.s32.totalorder %s18, 0
    %p81 = por %p79, %p80
    %p82 = scmp.ne.s32.totalorder %s70, %s71
    %p83 = scmp.eq.s32.totalorder %s19, 1
    %p84 = por %p82, %p83
    %p86 = scmp.ne.s32.totalorder %s71, %s85
    %p87 = scmp.eq.s32.totalorder %s19, 0
    %p88 = por %p86, %p87
    %s90 = sadd.s32 %s89, 1
    %p93 = scmp.eq.s32.totalorder %s13, 1
    %p94 = scmp.ne.s32.totalorder %s89, %s91
    %p95 = scmp.eq.s32.totalorder %s13, 0
    %p96 = por %p94, %p95
    %p97 = scmp.ne.s32.totalorder %s89, %s91
    %p98 = scmp.eq.s32.totalorder %s18, 1
    %p99 = por %p97, %p98
    %p100 = scmp.ne.s32.totalorder %s91, %s92
    %p101 = scmp.eq.s32.totalorder %s18, 0
    %p102 = por %p100, %p101
    %p103 = scmp.ne.s32.totalorder %s91, %s92
    %p104 = scmp.eq.s32.totalorder %s19, 1
    %p105 = por %p103, %p104
    %p107 = scmp.ne.s32.totalorder %s92, %s106
    %p108 = scmp.eq.s32.totalorder %s19, 0
    %p109 = por %p107, %p108
    %s111 = sadd.s32 %s110, 1
    %p114 = scmp.eq.s32.totalorder %s13, 1
    %p115 = scmp.ne.s32.totalorder %s110, %s112
    %p116 = scmp.eq.s32.totalorder %s13, 0
    %p117 = por %p115, %p116
    %p118 = scmp.ne.s32.totalorder %s110, %s112
    %p119 = scmp.eq.s32.totalorder %s18, 1
    %p120 = por %p118, %p119
    %p121 = scmp.ne.s32.totalorder %s112, %s113
    %p122 = scmp.eq.s32.totalorder %s18, 0
    %p123 = por %p121, %p122
    %p124 = scmp.ne.s32.totalorder %s112, %s113
    %p125 = scmp.eq.s32.totalorder %s19, 1
    %p126 = por %p124, %p125
    %p128 = scmp.ne.s32.totalorder %s113, %s127
    %p129 = scmp.eq.s32.totalorder %s19, 0
    %p130 = por %p128, %p129
    %s132 = sadd.s32 %s131, 1
    %p135 = scmp.eq.s32.totalorder %s13, 1
    %p136 = scmp.ne.s32.totalorder %s131, %s133
    %p137 = scmp.eq.s32.totalorder %s13, 0
    %p138 = por %p136, %p137
    %p139 = scmp.ne.s32.totalorder %s131, %s133
    %p140 = scmp.eq.s32.totalorder %s18, 1
    %p141 = por %p139, %p140
    %p142 = scmp.ne.s32.totalorder %s133, %s134
    %p143 = scmp.eq.s32.totalorder %s18, 0
    %p144 = por %p142, %p143
    %p145 = scmp.ne.s32.totalorder %s133, %s134
    %p146 = scmp.eq.s32.totalorder %s19, 1
    %p147 = por %p145, %p146
    %p149 = scmp.ne.s32.totalorder %s134, %s148
    %p150 = scmp.eq.s32.totalorder %s19, 0
    %p151 = por %p149, %p150
    %s153 = sadd.s32 %s152, 1
    %p156 = scmp.eq.s32.totalorder %s13, 1
    %p157 = scmp.ne.s32.totalorder %s152, %s154
    %p158 = scmp.eq.s32.totalorder %s13, 0
    %p159 = por %p157, %p158
    %p160 = scmp.ne.s32.totalorder %s152, %s154
    %p161 = scmp.eq.s32.totalorder %s18, 1
    %p162 = por %p160, %p161
    %p163 = scmp.ne.s32.totalorder %s154, %s155
    %p164 = scmp.eq.s32.totalorder %s18, 0
    %p165 = por %p163, %p164
    %p166 = scmp.ne.s32.totalorder %s154, %s155
    %p167 = scmp.eq.s32.totalorder %s19, 1
    %p168 = por %p166, %p167
    %p170 = scmp.ne.s32.totalorder %s155, %s169
    %p171 = scmp.eq.s32.totalorder %s19, 0
    %p172 = por %p170, %p171
    %s173 = ssub.s32 %s13, %s20
    %p174 = scmp.eq.s32.totalorder %s173, 0
    %s176 = sadd.s32 %s175, 1
    %s177 = scalar_select %p174, %s175, %s176
    %p180 = pneg %p174
    %p181 = scmp.eq.s32.totalorder %s13, 1
    %p182 = por %p180, %p181
    %p183 = scmp.ne.s32.totalorder %s175, %s178
    %p184 = scmp.eq.s32.totalorder %s13, 0
    %p185 = por %p183, %p184
    %p186 = scmp.ne.s32.totalorder %s175, %s178
    %p187 = scmp.eq.s32.totalorder %s18, 1
    %p188 = por %p186, %p187
    %p189 = scmp.ne.s32.totalorder %s178, %s179
    %p190 = scmp.eq.s32.totalorder %s18, 0
    %p191 = por %p189, %p190
    %p192 = scmp.ne.s32.totalorder %s178, %s179
    %p193 = scmp.eq.s32.totalorder %s19, 1
    %p194 = por %p192, %p193
    %p196 = scmp.ne.s32.totalorder %s179, %s195
    %p197 = scmp.eq.s32.totalorder %s19, 0
    %p198 = por %p196, %p197
    %p199 = scmp.le.s32.totalorder 1, %s13
    %p200 = scmp.lt.s32.totalorder %s13, 3
    %p201 = pnand %p199, %p200
    %p202 = pneg %p201
    // Predicated region
    $region9: #{tpu_custom_call.1} parent=5 // pred_check
      _
    $region10: #{tpu_custom_call.1} parent=5 // pred_check_branch
      %204 = sbr.rel (%p201) target = $region12
    $region11: #{tpu_custom_call.1} parent=5 // pred_region
      %s205 = ssub.s32 %s13, 1
      // Predicated region
      $region13: #{tpu_custom_call.1} parent=11 // pred_check
        %p206 = pneg %p60
      $region14: #{tpu_custom_call.1} parent=11 // pred_check_branch
        %208 = sbr.rel (%p206) target = $region16
      $region15: #{tpu_custom_call.1} parent=11 // pred_region
        _
      $region16: #{tpu_custom_call.1} parent=11 // pred_fallthru
        _
      // Predicated region
      $region17: #{tpu_custom_call.1} parent=11 // pred_check
        %p209 = pneg %p81
      $region18: #{tpu_custom_call.1} parent=11 // pred_check_branch
        %211 = sbr.rel (%p209) target = $region20
      $region19: #{tpu_custom_call.1} parent=11 // pred_region
        _
      $region20: #{tpu_custom_call.1} parent=11 // pred_fallthru
        _
      // Predicated region
      $region21: #{tpu_custom_call.1} parent=11 // pred_check
        %p212 = pneg %p102
      $region22: #{tpu_custom_call.1} parent=11 // pred_check_branch
        %214 = sbr.rel (%p212) target = $region24
      $region23: #{tpu_custom_call.1} parent=11 // pred_region
        _
      $region24: #{tpu_custom_call.1} parent=11 // pred_fallthru
        _
      // Predicated region
      $region25: #{tpu_custom_call.1} parent=11 // pred_check
        %p215 = pneg %p123
      $region26: #{tpu_custom_call.1} parent=11 // pred_check_branch
        %217 = sbr.rel (%p215) target = $region28
      $region27: #{tpu_custom_call.1} parent=11 // pred_region
        _
      $region28: #{tpu_custom_call.1} parent=11 // pred_fallthru
        _
      // Predicated region
      $region29: #{tpu_custom_call.1} parent=11 // pred_check
        %p218 = pneg %p144
      $region30: #{tpu_custom_call.1} parent=11 // pred_check_branch
        %220 = sbr.rel (%p218) target = $region32
      $region31: #{tpu_custom_call.1} parent=11 // pred_region
        _
      $region32: #{tpu_custom_call.1} parent=11 // pred_fallthru
        _
      // Predicated region
      $region33: #{tpu_custom_call.1} parent=11 // pred_check
        %p221 = pneg %p165
      $region34: #{tpu_custom_call.1} parent=11 // pred_check_branch
        %223 = sbr.rel (%p221) target = $region36
      $region35: #{tpu_custom_call.1} parent=11 // pred_region
        _
      $region36: #{tpu_custom_call.1} parent=11 // pred_fallthru
        _
    $region12: #{tpu_custom_call.1} parent=5 // pred_fallthru
      _
    %p224 = scmp.lt.s32.totalorder %s13, 2
    // Predicated region
    $region37: #{tpu_custom_call.1} parent=5 // pred_check
      %p225 = pneg %p224
    $region38: #{tpu_custom_call.1} parent=5 // pred_check_branch
      %227 = sbr.rel (%p225) target = $region40
    $region39: #{tpu_custom_call.1} parent=5 // pred_region
      // Predicated region
      $region41: #{tpu_custom_call.1} parent=39 // pred_check
        %p228 = pneg %p33
      $region42: #{tpu_custom_call.1} parent=39 // pred_check_branch
        %230 = sbr.rel (%p228) target = $region44
      $region43: #{tpu_custom_call.1} parent=39 // pred_region
        %s231 = smul.u32 80, %s13
        %p232 = scmp.lt.s32.totalorder %s231, 159
        %s233 = scalar_select %p232, %s231, 159
        %s234 = smul.addr %s233, 8
        %s235 = scalar_lea.vmem %s0, %s234
        %s236 = smul.u32 80, %s13
      $region44: #{tpu_custom_call.1} parent=39 // pred_fallthru
        _
    $region40: #{tpu_custom_call.1} parent=5 // pred_fallthru
      _
    %p237 = scmp.le.s32.totalorder 1, %s13
    %p238 = scmp.lt.s32.totalorder %s13, 3
    %p239 = pnand %p237, %p238
    %p240 = pneg %p239
    // Predicated region
    $region45: #{tpu_custom_call.1} parent=5 // pred_check
      _
    $region46: #{tpu_custom_call.1} parent=5 // pred_check_branch
      %242 = sbr.rel (%p239) target = $region48
    $region47: #{tpu_custom_call.1} parent=5 // pred_region
      %s243 = ssub.s32 %s13, 1
      %s244 = smul.u32 80, %s18
      %p245 = scmp.lt.s32.totalorder %s244, 159
      %s246 = scalar_select %p245, %s244, 159
      %s247 = smul.addr %s246, 8
      %s248 = scalar_lea.vmem %s0, %s247
      %p249 = pneg %p39
      %p250 = pneg %p36
      %p251 = pneg %p60
      %p252 = pneg %p57
      %p253 = pneg %p81
      %p254 = pneg %p78
      %p255 = pneg %p102
      %p256 = pneg %p99
      %p257 = pneg %p123
      %p258 = pneg %p120
      %p259 = pneg %p144
      %p260 = pneg %p141
      %p261 = pneg %p165
      %p262 = pneg %p162
      %p263 = pneg %p191
      %p264 = pneg %p188
      %s265 = smul.u32 80, %s18
      %p266 = scmp.lt.s32.totalorder %s265, 159
      %s267 = scalar_select %p266, %s265, 159
      %s268 = smul.addr %s267, 8
      %s269 = scalar_lea.vmem %s7, %s268
      %s270 = smul.u32 80, %s18
      %p271 = scmp.lt.s32.totalorder %s270, 159
      %s272 = scalar_select %p271, %s270, 159
      %s273 = smul.addr %s272, 8
      %s274 = scalar_lea.vmem %s0, %s273
      %s275 = smul.u32 80, %s18
      %s276 = smul.u32 80, %s18
      %p277 = scmp.lt.s32.totalorder %s276, 159
      %s278 = scalar_select %p277, %s276, 159
      %s279 = smul.addr %s278, 8
      %s280 = scalar_lea.vmem %s7, %s279
      %s281 = smul.u32 80, %s18
      %v282 = vld [vmem:[%s274] sm:$0xff]
      %v283 = vld [vmem:[%s274 + $0x8] sm:$0xff]
      %v284 = vld [vmem:[%s274 + $0x10] sm:$0xff]
      %v285 = vld [vmem:[%s274 + $0x18] sm:$0xff]
      %v286 = vld [vmem:[%s274 + $0x20] sm:$0xff]
      %v287 = vld [vmem:[%s274 + $0x28] sm:$0xff]
      %v288 = vld [vmem:[%s274 + $0x30] sm:$0xff]
      %v289 = vld [vmem:[%s274 + $0x38] sm:$0xff]
      %v290 = vld [vmem:[%s274 + $0x40] sm:$0xff]
      %v291 = vld [vmem:[%s274 + $0x48] sm:$0xff]
      %v292 = vld [vmem:[%s274 + $0x50] sm:$0xff]
      %v293 = vld [vmem:[%s274 + $0x58] sm:$0xff]
      %v294 = vld [vmem:[%s274 + $0x60] sm:$0xff]
      %v295 = vld [vmem:[%s274 + $0x68] sm:$0xff]
      %v296 = vld [vmem:[%s274 + $0x70] sm:$0xff]
      %v297 = vld [vmem:[%s274 + $0x78] sm:$0xff]
      %v298 = vld [vmem:[%s274 + $0x80] sm:$0xff]
      %v299 = vld [vmem:[%s274 + $0x88] sm:$0xff]
      %v300 = vld [vmem:[%s274 + $0x90] sm:$0xff]
      %v301 = vld [vmem:[%s274 + $0x98] sm:$0xff]
      %v302 = vld [vmem:[%s274 + $0xa0] sm:$0xff]
      %v303 = vld [vmem:[%s274 + $0xa8] sm:$0xff]
      %v304 = vld [vmem:[%s274 + $0xb0] sm:$0xff]
      %v305 = vld [vmem:[%s274 + $0xb8] sm:$0xff]
      %v306 = vld [vmem:[%s274 + $0xc0] sm:$0xff]
      %v307 = vld [vmem:[%s274 + $0xc8] sm:$0xff]
      %v308 = vld [vmem:[%s274 + $0xd0] sm:$0xff]
      %v309 = vld [vmem:[%s274 + $0xd8] sm:$0xff]
      %v310 = vld [vmem:[%s274 + $0xe0] sm:$0xff]
      %v311 = vld [vmem:[%s274 + $0xe8] sm:$0xff]
      %v312 = vld [vmem:[%s274 + $0xf0] sm:$0xff]
      %v313 = vld [vmem:[%s274 + $0xf8] sm:$0xff]
      %v314 = vld [vmem:[%s274 + $0x100] sm:$0xff]
      %v315 = vld [vmem:[%s274 + $0x108] sm:$0xff]
      %v316 = vld [vmem:[%s274 + $0x110] sm:$0xff]
      %v317 = vld [vmem:[%s274 + $0x118] sm:$0xff]
      %v318 = vld [vmem:[%s274 + $0x120] sm:$0xff]
      %v319 = vld [vmem:[%s274 + $0x128] sm:$0xff]
      %v320 = vld [vmem:[%s274 + $0x130] sm:$0xff]
      %v321 = vld [vmem:[%s274 + $0x138] sm:$0xff]
      %v322 = vld [vmem:[%s274 + $0x140] sm:$0xff]
      %v323 = vld [vmem:[%s274 + $0x148] sm:$0xff]
      %v324 = vld [vmem:[%s274 + $0x150] sm:$0xff]
      %v325 = vld [vmem:[%s274 + $0x158] sm:$0xff]
      %v326 = vld [vmem:[%s274 + $0x160] sm:$0xff]
      %v327 = vld [vmem:[%s274 + $0x168] sm:$0xff]
      %v328 = vld [vmem:[%s274 + $0x170] sm:$0xff]
      %v329 = vld [vmem:[%s274 + $0x178] sm:$0xff]
      %v330 = vld [vmem:[%s274 + $0x180] sm:$0xff]
      %v331 = vld [vmem:[%s274 + $0x188] sm:$0xff]
      %v332 = vld [vmem:[%s274 + $0x190] sm:$0xff]
      %v333 = vld [vmem:[%s274 + $0x198] sm:$0xff]
      %v334 = vld [vmem:[%s274 + $0x1a0] sm:$0xff]
      %v335 = vld [vmem:[%s274 + $0x1a8] sm:$0xff]
      %v336 = vld [vmem:[%s274 + $0x1b0] sm:$0xff]
      %v337 = vld [vmem:[%s274 + $0x1b8] sm:$0xff]
      %v338 = vld [vmem:[%s274 + $0x1c0] sm:$0xff]
      %v339 = vld [vmem:[%s274 + $0x1c8] sm:$0xff]
      %v340 = vld [vmem:[%s274 + $0x1d0] sm:$0xff]
      %v341 = vld [vmem:[%s274 + $0x1d8] sm:$0xff]
      %v342 = vld [vmem:[%s274 + $0x1e0] sm:$0xff]
      %v343 = vld [vmem:[%s274 + $0x1e8] sm:$0xff]
      %v344 = vld [vmem:[%s274 + $0x1f0] sm:$0xff]
      %v345 = vld [vmem:[%s274 + $0x1f8] sm:$0xff]
      %v346 = vld [vmem:[%s274 + $0x200] sm:$0xff]
      %v347 = vld [vmem:[%s274 + $0x208] sm:$0xff]
      %v348 = vld [vmem:[%s274 + $0x210] sm:$0xff]
      %v349 = vld [vmem:[%s274 + $0x218] sm:$0xff]
      %v350 = vld [vmem:[%s274 + $0x220] sm:$0xff]
      %v351 = vld [vmem:[%s274 + $0x228] sm:$0xff]
      %v352 = vld [vmem:[%s274 + $0x230] sm:$0xff]
      %v353 = vld [vmem:[%s274 + $0x238] sm:$0xff]
      %v354 = vld [vmem:[%s274 + $0x240] sm:$0xff]
      %v355 = vld [vmem:[%s274 + $0x248] sm:$0xff]
      %v356 = vld [vmem:[%s274 + $0x250] sm:$0xff]
      %v357 = vld [vmem:[%s274 + $0x258] sm:$0xff]
      %v358 = vld [vmem:[%s274 + $0x260] sm:$0xff]
      %v359 = vld [vmem:[%s274 + $0x268] sm:$0xff]
      %v360 = vld [vmem:[%s274 + $0x270] sm:$0xff]
      %v361 = vld [vmem:[%s274 + $0x278] sm:$0xff]
      %v362 = vld [vmem:[%s1] sm:$0xff]
      %v363 = vld [vmem:[%s1 + $0x8] sm:$0xff]
      %v364 = vld [vmem:[%s2] sm:$0x1]
      %v366 = vlaneseq
      %v367 = vshrl.u32 %v366, 7
      %v368 = vsub.s32 0, %v367
      %v369 = vrot.slane %v364, %v368
      %vm371 = vcmask 130048
      %v373 = vsel %vm371, %v282, 0
      %v376 = vsel %vm371, %v283, 0
      %v379 = vsel %vm371, %v284, 0
      %v382 = vsel %vm371, %v285, 0
      %v385 = vsel %vm371, %v286, 0
      %v388 = vsel %vm371, %v287, 0
      %v391 = vsel %vm371, %v288, 0
      %v394 = vsel %vm371, %v289, 0
      %v397 = vsel %vm371, %v290, 0
      %v400 = vsel %vm371, %v291, 0
      %v403 = vsel %vm371, %v292, 0
      %v406 = vsel %vm371, %v293, 0
      %v409 = vsel %vm371, %v294, 0
      %v412 = vsel %vm371, %v295, 0
      %v415 = vsel %vm371, %v296, 0
      %v418 = vsel %vm371, %v297, 0
      %v421 = vsel %vm371, %v298, 0
      %v424 = vsel %vm371, %v299, 0
      %v427 = vsel %vm371, %v300, 0
      %v430 = vsel %vm371, %v301, 0
      %v433 = vsel %vm371, %v302, 0
      %v436 = vsel %vm371, %v303, 0
      %v439 = vsel %vm371, %v304, 0
      %v442 = vsel %vm371, %v305, 0
      %v445 = vsel %vm371, %v306, 0
      %v448 = vsel %vm371, %v307, 0
      %v451 = vsel %vm371, %v308, 0
      %v454 = vsel %vm371, %v309, 0
      %v457 = vsel %vm371, %v310, 0
      %v460 = vsel %vm371, %v311, 0
      %v463 = vsel %vm371, %v312, 0
      %v466 = vsel %vm371, %v313, 0
      %v469 = vsel %vm371, %v314, 0
      %v472 = vsel %vm371, %v315, 0
      %v475 = vsel %vm371, %v316, 0
      %v478 = vsel %vm371, %v317, 0
      %v481 = vsel %vm371, %v318, 0
      %v484 = vsel %vm371, %v319, 0
      %v487 = vsel %vm371, %v320, 0
      %v490 = vsel %vm371, %v321, 0
      %v493 = vsel %vm371, %v322, 0
      %v496 = vsel %vm371, %v323, 0
      %v499 = vsel %vm371, %v324, 0
      %v502 = vsel %vm371, %v325, 0
      %v505 = vsel %vm371, %v326, 0
      %v508 = vsel %vm371, %v327, 0
      %v511 = vsel %vm371, %v328, 0
      %v514 = vsel %vm371, %v329, 0
      %v517 = vsel %vm371, %v330, 0
      %v520 = vsel %vm371, %v331, 0
      %v523 = vsel %vm371, %v332, 0
      %v526 = vsel %vm371, %v333, 0
      %v529 = vsel %vm371, %v334, 0
      %v532 = vsel %vm371, %v335, 0
      %v535 = vsel %vm371, %v336, 0
      %v538 = vsel %vm371, %v337, 0
      %v541 = vsel %vm371, %v338, 0
      %v544 = vsel %vm371, %v339, 0
      %v547 = vsel %vm371, %v340, 0
      %v550 = vsel %vm371, %v341, 0
      %v553 = vsel %vm371, %v342, 0
      %v556 = vsel %vm371, %v343, 0
      %v559 = vsel %vm371, %v344, 0
      %v562 = vsel %vm371, %v345, 0
      %v565 = vsel %vm371, %v346, 0
      %v568 = vsel %vm371, %v347, 0
      %v571 = vsel %vm371, %v348, 0
      %v574 = vsel %vm371, %v349, 0
      %v577 = vsel %vm371, %v350, 0
      %v580 = vsel %vm371, %v351, 0
      %v583 = vsel %vm371, %v352, 0
      %v586 = vsel %vm371, %v353, 0
      %v589 = vsel %vm371, %v354, 0
      %v592 = vsel %vm371, %v355, 0
      %v595 = vsel %vm371, %v356, 0
      %v598 = vsel %vm371, %v357, 0
      %v601 = vsel %vm371, %v358, 0
      %v604 = vsel %vm371, %v359, 0
      %v607 = vsel %vm371, %v360, 0
      %v610 = vsel %vm371, %v361, 0
      %612 = vmatprep.subr.mxu0 0.0
      %613 = vmatpush1.msra.mxu0 %v362
      %614 = vmatprep.subr.mxu0 0.0
      %615 = vmatpush1.msra.mxu0 %v363
      %616 = vmatprep.subr.mxu0 0.0
      %617 = vmatpush1.msra.mxu0 0.0
      %618 = vmatprep.subr.mxu0 0.0
      %619 = vmatpush1.msra.mxu0 0.0
      %620 = vmatprep.subr.mxu0 0.0
      %621 = vmatpush1.msra.mxu0 0.0
      %622 = vmatprep.subr.mxu0 0.0
      %623 = vmatpush1.msra.mxu0 0.0
      %624 = vmatprep.subr.mxu0 0.0
      %625 = vmatpush1.msra.mxu0 0.0
      %626 = vmatprep.subr.mxu0 0.0
      %627 = vmatpush1.msra.mxu0 0.0
      %628 = vmatprep.subr.mxu0 0.0
      %629 = vmatpush1.msra.mxu0 0.0
      %630 = vmatprep.subr.mxu0 0.0
      %631 = vmatpush1.msra.mxu0 0.0
      %632 = vmatprep.subr.mxu0 0.0
      %633 = vmatpush1.msra.mxu0 0.0
      %634 = vmatprep.subr.mxu0 0.0
      %635 = vmatpush1.msra.mxu0 0.0
      %636 = vmatprep.subr.mxu0 0.0
      %637 = vmatpush1.msra.mxu0 0.0
      %638 = vmatprep.subr.mxu0 0.0
      %639 = vmatpush1.msra.mxu0 0.0
      %640 = vmatprep.subr.mxu0 0.0
      %641 = vmatpush1.msra.mxu0 0.0
      %642 = vmatprep.subr.mxu0 0.0
      %643 = vmatpush1.msra.mxu0 0.0
      %644 = vmatprep.subr.mxu0 0.0
      %645 = vmatpush1.msra.mxu0 0.0
      %646 = vmatprep.subr.mxu0 0.0
      %647 = vmatpush1.msra.mxu0 0.0
      %648 = vmatprep.subr.mxu0 0.0
      %649 = vmatpush1.msra.mxu0 0.0
      %650 = vmatprep.subr.mxu0 0.0
      %651 = vmatpush1.msra.mxu0 0.0
      %652 = vmatprep.subr.mxu0 0.0
      %653 = vmatpush1.msra.mxu0 0.0
      %654 = vmatprep.subr.mxu0 0.0
      %655 = vmatpush1.msra.mxu0 0.0
      %656 = vmatprep.subr.mxu0 0.0
      %657 = vmatpush1.msra.mxu0 0.0
      %658 = vmatprep.subr.mxu0 0.0
      %659 = vmatpush1.msra.mxu0 0.0
      %660 = vmatprep.subr.mxu0 0.0
      %661 = vmatpush1.msra.mxu0 0.0
      %662 = vmatprep.subr.mxu0 0.0
      %663 = vmatpush1.msra.mxu0 0.0
      %664 = vmatprep.subr.mxu0 0.0
      %665 = vmatpush1.msra.mxu0 0.0
      %666 = vmatprep.subr.mxu0 0.0
      %667 = vmatpush1.msra.mxu0 0.0
      %668 = vmatprep.subr.mxu0 0.0
      %669 = vmatpush1.msra.mxu0 0.0
      %670 = vmatprep.subr.mxu0 0.0
      %671 = vmatpush1.msra.mxu0 0.0
      %672 = vmatprep.subr.mxu0 0.0
      %673 = vmatpush1.msra.mxu0 0.0
      %674 = vmatprep.subr.mxu0 0.0
      %675 = vmatpush1.msra.mxu0 0.0
      %676 = vmatprep.mubr.f32.mxu0 0.0
      %677 = vmatmul.mubr.f32.gmra.mrb[0].mxu0 %v373
      %v678 = vpop.f32.mrb[0].mxu0
      %v679 = vadd.f32 %v369, %v678
      %v680 = vpop.f32.mrb[0].mxu0
      %681 = vmatprep.mubr.f32.mxu0 0.0
      %682 = vmatmul.mubr.f32.gmra.mrb[0].mxu0 %v376
      %v683 = vpop.f32.mrb[0].mxu0
      %v684 = vadd.f32 %v369, %v683
      %v685 = vpop.f32.mrb[0].mxu0
      %686 = vmatprep.mubr.f32.mxu0 0.0
      %687 = vmatmul.mubr.f32.gmra.mrb[0].mxu0 %v379
      %v688 = vpop.f32.mrb[0].mxu0
      %v689 = vadd.f32 %v369, %v688
      %v690 = vpop.f32.mrb[0].mxu0
      %691 = vmatprep.mubr.f32.mxu0 0.0
      %692 = vmatmul.mubr.f32.gmra.mrb[0].mxu0 %v382
      %v693 = vpop.f32.mrb[0].mxu0
      %v694 = vadd.f32 %v369, %v693
      %v695 = vpop.f32.mrb[0].mxu0
      %696 = vmatprep.mubr.f32.mxu0 0.0
      %697 = vmatmul.mubr.f32.gmra.mrb[0].mxu0 %v385
      %v698 = vpop.f32.mrb[0].mxu0
      %v699 = vadd.f32 %v369, %v698
      %v700 = vpop.f32.mrb[0].mxu0
      %701 = vmatprep.mubr.f32.mxu0 0.0
      %702 = vmatmul.mubr.f32.gmra.mrb[0].mxu0 %v388
      %v703 = vpop.f32.mrb[0].mxu0
      %v704 = vadd.f32 %v369, %v703
      %v705 = vpop.f32.mrb[0].mxu0
      %706 = vmatprep.mubr.f32.mxu0 0.0
      %707 = vmatmul.mubr.f32.gmra.mrb[0].mxu0 %v391
      %v708 = vpop.f32.mrb[0].mxu0
      %v709 = vadd.f32 %v369, %v708
      %v710 = vpop.f32.mrb[0].mxu0
      %711 = vmatprep.mubr.f32.mxu0 0.0
      %712 = vmatmul.mubr.f32.gmra.mrb[0].mxu0 %v394
      %v713 = vpop.f32.mrb[0].mxu0
      %v714 = vadd.f32 %v369, %v713
      %v715 = vpop.f32.mrb[0].mxu0
      %716 = vmatprep.mubr.f32.mxu0 0.0
      %717 = vmatmul.mubr.f32.gmra.mrb[0].mxu0 %v397
      %v718 = vpop.f32.mrb[0].mxu0
      %v719 = vadd.f32 %v369, %v718
      %v720 = vpop.f32.mrb[0].mxu0
      %721 = vmatprep.mubr.f32.mxu0 0.0
      %722 = vmatmul.mubr.f32.gmra.mrb[0].mxu0 %v400
      %v723 = vpop.f32.mrb[0].mxu0
      %v724 = vadd.f32 %v369, %v723
      %v725 = vpop.f32.mrb[0].mxu0
      %726 = vmatprep.mubr.f32.mxu0 0.0
      %727 = vmatmul.mubr.f32.gmra.mrb[0].mxu0 %v403
      %v728 = vpop.f32.mrb[0].mxu0
      %v729 = vadd.f32 %v369, %v728
      %v730 = vpop.f32.mrb[0].mxu0
      %731 = vmatprep.mubr.f32.mxu0 0.0
      %732 = vmatmul.mubr.f32.gmra.mrb[0].mxu0 %v406
      %v733 = vpop.f32.mrb[0].mxu0
      %v734 = vadd.f32 %v369, %v733
      %v735 = vpop.f32.mrb[0].mxu0
      %736 = vmatprep.mubr.f32.mxu0 0.0
      %737 = vmatmul.mubr.f32.gmra.mrb[0].mxu0 %v409
      %v738 = vpop.f32.mrb[0].mxu0
      %v739 = vadd.f32 %v369, %v738
      %v740 = vpop.f32.mrb[0].mxu0
      %741 = vmatprep.mubr.f32.mxu0 0.0
      %742 = vmatmul.mubr.f32.gmra.mrb[0].mxu0 %v412
      %v743 = vpop.f32.mrb[0].mxu0
      %v744 = vadd.f32 %v369, %v743
      %v745 = vpop.f32.mrb[0].mxu0
      %746 = vmatprep.mubr.f32.mxu0 0.0
      %747 = vmatmul.mubr.f32.gmra.mrb[0].mxu0 %v415
      %v748 = vpop.f32.mrb[0].mxu0
      %v749 = vadd.f32 %v369, %v748
      %v750 = vpop.f32.mrb[0].mxu0
      %751 = vmatprep.mubr.f32.mxu0 0.0
      %752 = vmatmul.mubr.f32.gmra.mrb[0].mxu0 %v418
      %v753 = vpop.f32.mrb[0].mxu0
      %v754 = vadd.f32 %v369, %v753
      %v755 = vpop.f32.mrb[0].mxu0
      %756 = vmatprep.mubr.f32.mxu0 0.0
      %757 = vmatmul.mubr.f32.gmra.mrb[0].mxu0 %v421
      %v758 = vpop.f32.mrb[0].mxu0
      %v759 = vadd.f32 %v369, %v758
      %v760 = vpop.f32.mrb[0].mxu0
      %761 = vmatprep.mubr.f32.mxu0 0.0
      %762 = vmatmul.mubr.f32.gmra.mrb[0].mxu0 %v424
      %v763 = vpop.f32.mrb[0].mxu0
      %v764 = vadd.f32 %v369, %v763
      %v765 = vpop.f32.mrb[0].mxu0
      %766 = vmatprep.mubr.f32.mxu0 0.0
      %767 = vmatmul.mubr.f32.gmra.mrb[0].mxu0 %v427
      %v768 = vpop.f32.mrb[0].mxu0
      %v769 = vadd.f32 %v369, %v768
      %v770 = vpop.f32.mrb[0].mxu0
      %771 = vmatprep.mubr.f32.mxu0 0.0
      %772 = vmatmul.mubr.f32.gmra.mrb[0].mxu0 %v430
      %v773 = vpop.f32.mrb[0].mxu0
      %v774 = vadd.f32 %v369, %v773
      %v775 = vpop.f32.mrb[0].mxu0
      %776 = vmatprep.mubr.f32.mxu0 0.0
      %777 = vmatmul.mubr.f32.gmra.mrb[0].mxu0 %v433
      %v778 = vpop.f32.mrb[0].mxu0
      %v779 = vadd.f32 %v369, %v778
      %v780 = vpop.f32.mrb[0].mxu0
      %781 = vmatprep.mubr.f32.mxu0 0.0
      %782 = vmatmul.mubr.f32.gmra.mrb[0].mxu0 %v436
      %v783 = vpop.f32.mrb[0].mxu0
      %v784 = vadd.f32 %v369, %v783
      %v785 = vpop.f32.mrb[0].mxu0
      %786 = vmatprep.mubr.f32.mxu0 0.0
      %787 = vmatmul.mubr.f32.gmra.mrb[0].mxu0 %v439
      %v788 = vpop.f32.mrb[0].mxu0
      %v789 = vadd.f32 %v369, %v788
      %v790 = vpop.f32.mrb[0].mxu0
      %791 = vmatprep.mubr.f32.mxu0 0.0
      %792 = vmatmul.mubr.f32.gmra.mrb[0].mxu0 %v442
      %v793 = vpop.f32.mrb[0].mxu0
      %v794 = vadd.f32 %v369, %v793
      %v795 = vpop.f32.mrb[0].mxu0
      %796 = vmatprep.mubr.f32.mxu0 0.0
      %797 = vmatmul.mubr.f32.gmra.mrb[0].mxu0 %v445
      %v798 = vpop.f32.mrb[0].mxu0
      %v799 = vadd.f32 %v369, %v798
      %v800 = vpop.f32.mrb[0].mxu0
      %801 = vmatprep.mubr.f32.mxu0 0.0
      %802 = vmatmul.mubr.f32.gmra.mrb[0].mxu0 %v448
      %v803 = vpop.f32.mrb[0].mxu0
      %v804 = vadd.f32 %v369, %v803
      %v805 = vpop.f32.mrb[0].mxu0
      %806 = vmatprep.mubr.f32.mxu0 0.0
      %807 = vmatmul.mubr.f32.gmra.mrb[0].mxu0 %v451
      %v808 = vpop.f32.mrb[0].mxu0
      %v809 = vadd.f32 %v369, %v808
      %v810 = vpop.f32.mrb[0].mxu0
      %811 = vmatprep.mubr.f32.mxu0 0.0
      %812 = vmatmul.mubr.f32.gmra.mrb[0].mxu0 %v454
      %v813 = vpop.f32.mrb[0].mxu0
      %v814 = vadd.f32 %v369, %v813
      %v815 = vpop.f32.mrb[0].mxu0
      %816 = vmatprep.mubr.f32.mxu0 0.0
      %817 = vmatmul.mubr.f32.gmra.mrb[0].mxu0 %v457
      %v818 = vpop.f32.mrb[0].mxu0
      %v819 = vadd.f32 %v369, %v818
      %v820 = vpop.f32.mrb[0].mxu0
      %821 = vmatprep.mubr.f32.mxu0 0.0
      %822 = vmatmul.mubr.f32.gmra.mrb[0].mxu0 %v460
      %v823 = vpop.f32.mrb[0].mxu0
      %v824 = vadd.f32 %v369, %v823
      %v825 = vpop.f32.mrb[0].mxu0
      %826 = vmatprep.mubr.f32.mxu0 0.0
      %827 = vmatmul.mubr.f32.gmra.mrb[0].mxu0 %v463
      %v828 = vpop.f32.mrb[0].mxu0
      %v829 = vadd.f32 %v369, %v828
      %v830 = vpop.f32.mrb[0].mxu0
      %831 = vmatprep.mubr.f32.mxu0 0.0
      %832 = vmatmul.mubr.f32.gmra.mrb[0].mxu0 %v466
      %v833 = vpop.f32.mrb[0].mxu0
      %v834 = vadd.f32 %v369, %v833
      %v835 = vpop.f32.mrb[0].mxu0
      %836 = vmatprep.mubr.f32.mxu0 0.0
      %837 = vmatmul.mubr.f32.gmra.mrb[0].mxu0 %v469
      %v838 = vpop.f32.mrb[0].mxu0
      %v839 = vadd.f32 %v369, %v838
      %v840 = vpop.f32.mrb[0].mxu0
      %841 = vmatprep.mubr.f32.mxu0 0.0
      %842 = vmatmul.mubr.f32.gmra.mrb[0].mxu0 %v472
      %v843 = vpop.f32.mrb[0].mxu0
      %v844 = vadd.f32 %v369, %v843
      %v845 = vpop.f32.mrb[0].mxu0
      %846 = vmatprep.mubr.f32.mxu0 0.0
      %847 = vmatmul.mubr.f32.gmra.mrb[0].mxu0 %v475
      %v848 = vpop.f32.mrb[0].mxu0
      %v849 = vadd.f32 %v369, %v848
      %v850 = vpop.f32.mrb[0].mxu0
      %851 = vmatprep.mubr.f32.mxu0 0.0
      %852 = vmatmul.mubr.f32.gmra.mrb[0].mxu0 %v478
      %v853 = vpop.f32.mrb[0].mxu0
      %v854 = vadd.f32 %v369, %v853
      %v855 = vpop.f32.mrb[0].mxu0
      %856 = vmatprep.mubr.f32.mxu0 0.0
      %857 = vmatmul.mubr.f32.gmra.mrb[0].mxu0 %v481
      %v858 = vpop.f32.mrb[0].mxu0
      %v859 = vadd.f32 %v369, %v858
      %v860 = vpop.f32.mrb[0].mxu0
      %861 = vmatprep.mubr.f32.mxu0 0.0
      %862 = vmatmul.mubr.f32.gmra.mrb[0].mxu0 %v484
      %v863 = vpop.f32.mrb[0].mxu0
      %v864 = vadd.f32 %v369, %v863
      %v865 = vpop.f32.mrb[0].mxu0
      %866 = vmatprep.mubr.f32.mxu0 0.0
      %867 = vmatmul.mubr.f32.gmra.mrb[0].mxu0 %v487
      %v868 = vpop.f32.mrb[0].mxu0
      %v869 = vadd.f32 %v369, %v868
      %v870 = vpop.f32.mrb[0].mxu0
      %871 = vmatprep.mubr.f32.mxu0 0.0
      %872 = vmatmul.mubr.f32.gmra.mrb[0].mxu0 %v490
      %v873 = vpop.f32.mrb[0].mxu0
      %v874 = vadd.f32 %v369, %v873
      %v875 = vpop.f32.mrb[0].mxu0
      %876 = vmatprep.mubr.f32.mxu0 0.0
      %877 = vmatmul.mubr.f32.gmra.mrb[0].mxu0 %v493
      %v878 = vpop.f32.mrb[0].mxu0
      %v879 = vadd.f32 %v369, %v878
      %v880 = vpop.f32.mrb[0].mxu0
      %881 = vmatprep.mubr.f32.mxu0 0.0
      %882 = vmatmul.mubr.f32.gmra.mrb[0].mxu0 %v496
      %v883 = vpop.f32.mrb[0].mxu0
      %v884 = vadd.f32 %v369, %v883
      %v885 = vpop.f32.mrb[0].mxu0
      %886 = vmatprep.mubr.f32.mxu0 0.0
      %887 = vmatmul.mubr.f32.gmra.mrb[0].mxu0 %v499
      %v888 = vpop.f32.mrb[0].mxu0
      %v889 = vadd.f32 %v369, %v888
      %v890 = vpop.f32.mrb[0].mxu0
      %891 = vmatprep.mubr.f32.mxu0 0.0
      %892 = vmatmul.mubr.f32.gmra.mrb[0].mxu0 %v502
      %v893 = vpop.f32.mrb[0].mxu0
      %v894 = vadd.f32 %v369, %v893
      %v895 = vpop.f32.mrb[0].mxu0
      %896 = vmatprep.mubr.f32.mxu0 0.0
      %897 = vmatmul.mubr.f32.gmra.mrb[0].mxu0 %v505
      %v898 = vpop.f32.mrb[0].mxu0
      %v899 = vadd.f32 %v369, %v898
      %v900 = vpop.f32.mrb[0].mxu0
      %901 = vmatprep.mubr.f32.mxu0 0.0
      %902 = vmatmul.mubr.f32.gmra.mrb[0].mxu0 %v508
      %v903 = vpop.f32.mrb[0].mxu0
      %v904 = vadd.f32 %v369, %v903
      %v905 = vpop.f32.mrb[0].mxu0
      %906 = vmatprep.mubr.f32.mxu0 0.0
      %907 = vmatmul.mubr.f32.gmra.mrb[0].mxu0 %v511
      %v908 = vpop.f32.mrb[0].mxu0
      %v909 = vadd.f32 %v369, %v908
      %v910 = vpop.f32.mrb[0].mxu0
      %911 = vmatprep.mubr.f32.mxu0 0.0
      %912 = vmatmul.mubr.f32.gmra.mrb[0].mxu0 %v514
      %v913 = vpop.f32.mrb[0].mxu0
      %v914 = vadd.f32 %v369, %v913
      %v915 = vpop.f32.mrb[0].mxu0
      %916 = vmatprep.mubr.f32.mxu0 0.0
      %917 = vmatmul.mubr.f32.gmra.mrb[0].mxu0 %v517
      %v918 = vpop.f32.mrb[0].mxu0
      %v919 = vadd.f32 %v369, %v918
      %v920 = vpop.f32.mrb[0].mxu0
      %921 = vmatprep.mubr.f32.mxu0 0.0
      %922 = vmatmul.mubr.f32.gmra.mrb[0].mxu0 %v520
      %v923 = vpop.f32.mrb[0].mxu0
      %v924 = vadd.f32 %v369, %v923
      %v925 = vpop.f32.mrb[0].mxu0
      %926 = vmatprep.mubr.f32.mxu0 0.0
      %927 = vmatmul.mubr.f32.gmra.mrb[0].mxu0 %v523
      %v928 = vpop.f32.mrb[0].mxu0
      %v929 = vadd.f32 %v369, %v928
      %v930 = vpop.f32.mrb[0].mxu0
      %931 = vmatprep.mubr.f32.mxu0 0.0
      %932 = vmatmul.mubr.f32.gmra.mrb[0].mxu0 %v526
      %v933 = vpop.f32.mrb[0].mxu0
      %v934 = vadd.f32 %v369, %v933
      %v935 = vpop.f32.mrb[0].mxu0
      %936 = vmatprep.mubr.f32.mxu0 0.0
      %937 = vmatmul.mubr.f32.gmra.mrb[0].mxu0 %v529
      %v938 = vpop.f32.mrb[0].mxu0
      %v939 = vadd.f32 %v369, %v938
      %v940 = vpop.f32.mrb[0].mxu0
      %941 = vmatprep.mubr.f32.mxu0 0.0
      %942 = vmatmul.mubr.f32.gmra.mrb[0].mxu0 %v532
      %v943 = vpop.f32.mrb[0].mxu0
      %v944 = vadd.f32 %v369, %v943
      %v945 = vpop.f32.mrb[0].mxu0
      %946 = vmatprep.mubr.f32.mxu0 0.0
      %947 = vmatmul.mubr.f32.gmra.mrb[0].mxu0 %v535
      %v948 = vpop.f32.mrb[0].mxu0
      %v949 = vadd.f32 %v369, %v948
      %v950 = vpop.f32.mrb[0].mxu0
      %951 = vmatprep.mubr.f32.mxu0 0.0
      %952 = vmatmul.mubr.f32.gmra.mrb[0].mxu0 %v538
      %v953 = vpop.f32.mrb[0].mxu0
      %v954 = vadd.f32 %v369, %v953
      %v955 = vpop.f32.mrb[0].mxu0
      %956 = vmatprep.mubr.f32.mxu0 0.0
      %957 = vmatmul.mubr.f32.gmra.mrb[0].mxu0 %v541
      %v958 = vpop.f32.mrb[0].mxu0
      %v959 = vadd.f32 %v369, %v958
      %v960 = vpop.f32.mrb[0].mxu0
      %961 = vmatprep.mubr.f32.mxu0 0.0
      %962 = vmatmul.mubr.f32.gmra.mrb[0].mxu0 %v544
      %v963 = vpop.f32.mrb[0].mxu0
      %v964 = vadd.f32 %v369, %v963
      %v965 = vpop.f32.mrb[0].mxu0
      %966 = vmatprep.mubr.f32.mxu0 0.0
      %967 = vmatmul.mubr.f32.gmra.mrb[0].mxu0 %v547
      %v968 = vpop.f32.mrb[0].mxu0
      %v969 = vadd.f32 %v369, %v968
      %v970 = vpop.f32.mrb[0].mxu0
      %971 = vmatprep.mubr.f32.mxu0 0.0
      %972 = vmatmul.mubr.f32.gmra.mrb[0].mxu0 %v550
      %v973 = vpop.f32.mrb[0].mxu0
      %v974 = vadd.f32 %v369, %v973
      %v975 = vpop.f32.mrb[0].mxu0
      %976 = vmatprep.mubr.f32.mxu0 0.0
      %977 = vmatmul.mubr.f32.gmra.mrb[0].mxu0 %v553
      %v978 = vpop.f32.mrb[0].mxu0
      %v979 = vadd.f32 %v369, %v978
      %v980 = vpop.f32.mrb[0].mxu0
      %981 = vmatprep.mubr.f32.mxu0 0.0
      %982 = vmatmul.mubr.f32.gmra.mrb[0].mxu0 %v556
      %v983 = vpop.f32.mrb[0].mxu0
      %v984 = vadd.f32 %v369, %v983
      %v985 = vpop.f32.mrb[0].mxu0
      %986 = vmatprep.mubr.f32.mxu0 0.0
      %987 = vmatmul.mubr.f32.gmra.mrb[0].mxu0 %v559
      %v988 = vpop.f32.mrb[0].mxu0
      %v989 = vadd.f32 %v369, %v988
      %v990 = vpop.f32.mrb[0].mxu0
      %991 = vmatprep.mubr.f32.mxu0 0.0
      %992 = vmatmul.mubr.f32.gmra.mrb[0].mxu0 %v562
      %v993 = vpop.f32.mrb[0].mxu0
      %v994 = vadd.f32 %v369, %v993
      %v995 = vpop.f32.mrb[0].mxu0
      %996 = vmatprep.mubr.f32.mxu0 0.0
      %997 = vmatmul.mubr.f32.gmra.mrb[0].mxu0 %v565
      %v998 = vpop.f32.mrb[0].mxu0
      %v999 = vadd.f32 %v369, %v998
      %v1000 = vpop.f32.mrb[0].mxu0
      %1001 = vmatprep.mubr.f32.mxu0 0.0
      %1002 = vmatmul.mubr.f32.gmra.mrb[0].mxu0 %v568
      %v1003 = vpop.f32.mrb[0].mxu0
      %v1004 = vadd.f32 %v369, %v1003
      %v1005 = vpop.f32.mrb[0].mxu0
      %1006 = vmatprep.mubr.f32.mxu0 0.0
      %1007 = vmatmul.mubr.f32.gmra.mrb[0].mxu0 %v571
      %v1008 = vpop.f32.mrb[0].mxu0
      %v1009 = vadd.f32 %v369, %v1008
      %v1010 = vpop.f32.mrb[0].mxu0
      %1011 = vmatprep.mubr.f32.mxu0 0.0
      %1012 = vmatmul.mubr.f32.gmra.mrb[0].mxu0 %v574
      %v1013 = vpop.f32.mrb[0].mxu0
      %v1014 = vadd.f32 %v369, %v1013
      %v1015 = vpop.f32.mrb[0].mxu0
      %1016 = vmatprep.mubr.f32.mxu0 0.0
      %1017 = vmatmul.mubr.f32.gmra.mrb[0].mxu0 %v577
      %v1018 = vpop.f32.mrb[0].mxu0
      %v1019 = vadd.f32 %v369, %v1018
      %v1020 = vpop.f32.mrb[0].mxu0
      %1021 = vmatprep.mubr.f32.mxu0 0.0
      %1022 = vmatmul.mubr.f32.gmra.mrb[0].mxu0 %v580
      %v1023 = vpop.f32.mrb[0].mxu0
      %v1024 = vadd.f32 %v369, %v1023
      %v1025 = vpop.f32.mrb[0].mxu0
      %1026 = vmatprep.mubr.f32.mxu0 0.0
      %1027 = vmatmul.mubr.f32.gmra.mrb[0].mxu0 %v583
      %v1028 = vpop.f32.mrb[0].mxu0
      %v1029 = vadd.f32 %v369, %v1028
      %v1030 = vpop.f32.mrb[0].mxu0
      %1031 = vmatprep.mubr.f32.mxu0 0.0
      %1032 = vmatmul.mubr.f32.gmra.mrb[0].mxu0 %v586
      %v1033 = vpop.f32.mrb[0].mxu0
      %v1034 = vadd.f32 %v369, %v1033
      %v1035 = vpop.f32.mrb[0].mxu0
      %1036 = vmatprep.mubr.f32.mxu0 0.0
      %1037 = vmatmul.mubr.f32.gmra.mrb[0].mxu0 %v589
      %v1038 = vpop.f32.mrb[0].mxu0
      %v1039 = vadd.f32 %v369, %v1038
      %v1040 = vpop.f32.mrb[0].mxu0
      %1041 = vmatprep.mubr.f32.mxu0 0.0
      %1042 = vmatmul.mubr.f32.gmra.mrb[0].mxu0 %v592
      %v1043 = vpop.f32.mrb[0].mxu0
      %v1044 = vadd.f32 %v369, %v1043
      %v1045 = vpop.f32.mrb[0].mxu0
      %1046 = vmatprep.mubr.f32.mxu0 0.0
      %1047 = vmatmul.mubr.f32.gmra.mrb[0].mxu0 %v595
      %v1048 = vpop.f32.mrb[0].mxu0
      %v1049 = vadd.f32 %v369, %v1048
      %v1050 = vpop.f32.mrb[0].mxu0
      %1051 = vmatprep.mubr.f32.mxu0 0.0
      %1052 = vmatmul.mubr.f32.gmra.mrb[0].mxu0 %v598
      %v1053 = vpop.f32.mrb[0].mxu0
      %v1054 = vadd.f32 %v369, %v1053
      %v1055 = vpop.f32.mrb[0].mxu0
      %1056 = vmatprep.mubr.f32.mxu0 0.0
      %1057 = vmatmul.mubr.f32.gmra.mrb[0].mxu0 %v601
      %v1058 = vpop.f32.mrb[0].mxu0
      %v1059 = vadd.f32 %v369, %v1058
      %v1060 = vpop.f32.mrb[0].mxu0
      %1061 = vmatprep.mubr.f32.mxu0 0.0
      %1062 = vmatmul.mubr.f32.gmra.mrb[0].mxu0 %v604
      %v1063 = vpop.f32.mrb[0].mxu0
      %v1064 = vadd.f32 %v369, %v1063
      %v1065 = vpop.f32.mrb[0].mxu0
      %1066 = vmatprep.mubr.f32.mxu0 0.0
      %1067 = vmatmul.mubr.f32.gmra.mrb[0].mxu0 %v607
      %v1068 = vpop.f32.mrb[0].mxu0
      %v1069 = vadd.f32 %v369, %v1068
      %v1070 = vpop.f32.mrb[0].mxu0
      %1071 = vmatprep.mubr.f32.mxu0 0.0
      %1072 = vmatmul.mubr.f32.gmra.mrb[0].mxu0 %v610
      %v1073 = vpop.f32.mrb[0].mxu0
      %v1074 = vadd.f32 %v369, %v1073
      %v1075 = vpop.f32.mrb[0].mxu0
      %1076 = vdwg.mxu0
      %v1077 = vadd.f32 %v679, 3.0
      %v1078 = vadd.f32 %v684, 3.0
      %v1079 = vadd.f32 %v689, 3.0
      %v1080 = vadd.f32 %v694, 3.0
      %v1081 = vadd.f32 %v699, 3.0
      %v1082 = vadd.f32 %v704, 3.0
      %v1083 = vadd.f32 %v709, 3.0
      %v1084 = vadd.f32 %v714, 3.0
      %v1085 = vadd.f32 %v719, 3.0
      %v1086 = vadd.f32 %v724, 3.0
      %v1087 = vadd.f32 %v729, 3.0
      %v1088 = vadd.f32 %v734, 3.0
      %v1089 = vadd.f32 %v739, 3.0
      %v1090 = vadd.f32 %v744, 3.0
      %v1091 = vadd.f32 %v749, 3.0
      %v1092 = vadd.f32 %v754, 3.0
      %v1093 = vadd.f32 %v759, 3.0
      %v1094 = vadd.f32 %v764, 3.0
      %v1095 = vadd.f32 %v769, 3.0
      %v1096 = vadd.f32 %v774, 3.0
      %v1097 = vadd.f32 %v779, 3.0
      %v1098 = vadd.f32 %v784, 3.0
      %v1099 = vadd.f32 %v789, 3.0
      %v1100 = vadd.f32 %v794, 3.0
      %v1101 = vadd.f32 %v799, 3.0
      %v1102 = vadd.f32 %v804, 3.0
      %v1103 = vadd.f32 %v809, 3.0
      %v1104 = vadd.f32 %v814, 3.0
      %v1105 = vadd.f32 %v819, 3.0
      %v1106 = vadd.f32 %v824, 3.0
      %v1107 = vadd.f32 %v829, 3.0
      %v1108 = vadd.f32 %v834, 3.0
      %v1109 = vadd.f32 %v839, 3.0
      %v1110 = vadd.f32 %v844, 3.0
      %v1111 = vadd.f32 %v849, 3.0
      %v1112 = vadd.f32 %v854, 3.0
      %v1113 = vadd.f32 %v859, 3.0
      %v1114 = vadd.f32 %v864, 3.0
      %v1115 = vadd.f32 %v869, 3.0
      %v1116 = vadd.f32 %v874, 3.0
      %v1117 = vadd.f32 %v879, 3.0
      %v1118 = vadd.f32 %v884, 3.0
      %v1119 = vadd.f32 %v889, 3.0
      %v1120 = vadd.f32 %v894, 3.0
      %v1121 = vadd.f32 %v899, 3.0
      %v1122 = vadd.f32 %v904, 3.0
      %v1123 = vadd.f32 %v909, 3.0
      %v1124 = vadd.f32 %v914, 3.0
      %v1125 = vadd.f32 %v919, 3.0
      %v1126 = vadd.f32 %v924, 3.0
      %v1127 = vadd.f32 %v929, 3.0
      %v1128 = vadd.f32 %v934, 3.0
      %v1129 = vadd.f32 %v939, 3.0
      %v1130 = vadd.f32 %v944, 3.0
      %v1131 = vadd.f32 %v949, 3.0
      %v1132 = vadd.f32 %v954, 3.0
      %v1133 = vadd.f32 %v959, 3.0
      %v1134 = vadd.f32 %v964, 3.0
      %v1135 = vadd.f32 %v969, 3.0
      %v1136 = vadd.f32 %v974, 3.0
      %v1137 = vadd.f32 %v979, 3.0
      %v1138 = vadd.f32 %v984, 3.0
      %v1139 = vadd.f32 %v989, 3.0
      %v1140 = vadd.f32 %v994, 3.0
      %v1141 = vadd.f32 %v999, 3.0
      %v1142 = vadd.f32 %v1004, 3.0
      %v1143 = vadd.f32 %v1009, 3.0
      %v1144 = vadd.f32 %v1014, 3.0
      %v1145 = vadd.f32 %v1019, 3.0
      %v1146 = vadd.f32 %v1024, 3.0
      %v1147 = vadd.f32 %v1029, 3.0
      %v1148 = vadd.f32 %v1034, 3.0
      %v1149 = vadd.f32 %v1039, 3.0
      %v1150 = vadd.f32 %v1044, 3.0
      %v1151 = vadd.f32 %v1049, 3.0
      %v1152 = vadd.f32 %v1054, 3.0
      %v1153 = vadd.f32 %v1059, 3.0
      %v1154 = vadd.f32 %v1064, 3.0
      %v1155 = vadd.f32 %v1069, 3.0
      %v1156 = vadd.f32 %v1074, 3.0
      %v1157 = vmax.f32 %v1077, 0.0
      %v1158 = vmax.f32 %v1078, 0.0
      %v1159 = vmax.f32 %v1079, 0.0
      %v1160 = vmax.f32 %v1080, 0.0
      %v1161 = vmax.f32 %v1081, 0.0
      %v1162 = vmax.f32 %v1082, 0.0
      %v1163 = vmax.f32 %v1083, 0.0
      %v1164 = vmax.f32 %v1084, 0.0
      %v1165 = vmax.f32 %v1085, 0.0
      %v1166 = vmax.f32 %v1086, 0.0
      %v1167 = vmax.f32 %v1087, 0.0
      %v1168 = vmax.f32 %v1088, 0.0
      %v1169 = vmax.f32 %v1089, 0.0
      %v1170 = vmax.f32 %v1090, 0.0
      %v1171 = vmax.f32 %v1091, 0.0
      %v1172 = vmax.f32 %v1092, 0.0
      %v1173 = vmax.f32 %v1093, 0.0
      %v1174 = vmax.f32 %v1094, 0.0
      %v1175 = vmax.f32 %v1095, 0.0
      %v1176 = vmax.f32 %v1096, 0.0
      %v1177 = vmax.f32 %v1097, 0.0
      %v1178 = vmax.f32 %v1098, 0.0
      %v1179 = vmax.f32 %v1099, 0.0
      %v1180 = vmax.f32 %v1100, 0.0
      %v1181 = vmax.f32 %v1101, 0.0
      %v1182 = vmax.f32 %v1102, 0.0
      %v1183 = vmax.f32 %v1103, 0.0
      %v1184 = vmax.f32 %v1104, 0.0
      %v1185 = vmax.f32 %v1105, 0.0
      %v1186 = vmax.f32 %v1106, 0.0
      %v1187 = vmax.f32 %v1107, 0.0
      %v1188 = vmax.f32 %v1108, 0.0
      %v1189 = vmax.f32 %v1109, 0.0
      %v1190 = vmax.f32 %v1110, 0.0
      %v1191 = vmax.f32 %v1111, 0.0
      %v1192 = vmax.f32 %v1112, 0.0
      %v1193 = vmax.f32 %v1113, 0.0
      %v1194 = vmax.f32 %v1114, 0.0
      %v1195 = vmax.f32 %v1115, 0.0
      %v1196 = vmax.f32 %v1116, 0.0
      %v1197 = vmax.f32 %v1117, 0.0
      %v1198 = vmax.f32 %v1118, 0.0
      %v1199 = vmax.f32 %v1119, 0.0
      %v1200 = vmax.f32 %v1120, 0.0
      %v1201 = vmax.f32 %v1121, 0.0
      %v1202 = vmax.f32 %v1122, 0.0
      %v1203 = vmax.f32 %v1123, 0.0
      %v1204 = vmax.f32 %v1124, 0.0
      %v1205 = vmax.f32 %v1125, 0.0
      %v1206 = vmax.f32 %v1126, 0.0
      %v1207 = vmax.f32 %v1127, 0.0
      %v1208 = vmax.f32 %v1128, 0.0
      %v1209 = vmax.f32 %v1129, 0.0
      %v1210 = vmax.f32 %v1130, 0.0
      %v1211 = vmax.f32 %v1131, 0.0
      %v1212 = vmax.f32 %v1132, 0.0
      %v1213 = vmax.f32 %v1133, 0.0
      %v1214 = vmax.f32 %v1134, 0.0
      %v1215 = vmax.f32 %v1135, 0.0
      %v1216 = vmax.f32 %v1136, 0.0
      %v1217 = vmax.f32 %v1137, 0.0
      %v1218 = vmax.f32 %v1138, 0.0
      %v1219 = vmax.f32 %v1139, 0.0
      %v1220 = vmax.f32 %v1140, 0.0
      %v1221 = vmax.f32 %v1141, 0.0
      %v1222 = vmax.f32 %v1142, 0.0
      %v1223 = vmax.f32 %v1143, 0.0
      %v1224 = vmax.f32 %v1144, 0.0
      %v1225 = vmax.f32 %v1145, 0.0
      %v1226 = vmax.f32 %v1146, 0.0
      %v1227 = vmax.f32 %v1147, 0.0
      %v1228 = vmax.f32 %v1148, 0.0
      %v1229 = vmax.f32 %v1149, 0.0
      %v1230 = vmax.f32 %v1150, 0.0
      %v1231 = vmax.f32 %v1151, 0.0
      %v1232 = vmax.f32 %v1152, 0.0
      %v1233 = vmax.f32 %v1153, 0.0
      %v1234 = vmax.f32 %v1154, 0.0
      %v1235 = vmax.f32 %v1155, 0.0
      %v1236 = vmax.f32 %v1156, 0.0
      %v1237 = vmin.f32 %v1157, 6.0
      %v1238 = vmin.f32 %v1158, 6.0
      %v1239 = vmin.f32 %v1159, 6.0
      %v1240 = vmin.f32 %v1160, 6.0
      %v1241 = vmin.f32 %v1161, 6.0
      %v1242 = vmin.f32 %v1162, 6.0
      %v1243 = vmin.f32 %v1163, 6.0
      %v1244 = vmin.f32 %v1164, 6.0
      %v1245 = vmin.f32 %v1165, 6.0
      %v1246 = vmin.f32 %v1166, 6.0
      %v1247 = vmin.f32 %v1167, 6.0
      %v1248 = vmin.f32 %v1168, 6.0
      %v1249 = vmin.f32 %v1169, 6.0
      %v1250 = vmin.f32 %v1170, 6.0
      %v1251 = vmin.f32 %v1171, 6.0
      %v1252 = vmin.f32 %v1172, 6.0
      %v1253 = vmin.f32 %v1173, 6.0
      %v1254 = vmin.f32 %v1174, 6.0
      %v1255 = vmin.f32 %v1175, 6.0
      %v1256 = vmin.f32 %v1176, 6.0
      %v1257 = vmin.f32 %v1177, 6.0
      %v1258 = vmin.f32 %v1178, 6.0
      %v1259 = vmin.f32 %v1179, 6.0
      %v1260 = vmin.f32 %v1180, 6.0
      %v1261 = vmin.f32 %v1181, 6.0
      %v1262 = vmin.f32 %v1182, 6.0
      %v1263 = vmin.f32 %v1183, 6.0
      %v1264 = vmin.f32 %v1184, 6.0
      %v1265 = vmin.f32 %v1185, 6.0
      %v1266 = vmin.f32 %v1186, 6.0
      %v1267 = vmin.f32 %v1187, 6.0
      %v1268 = vmin.f32 %v1188, 6.0
      %v1269 = vmin.f32 %v1189, 6.0
      %v1270 = vmin.f32 %v1190, 6.0
      %v1271 = vmin.f32 %v1191, 6.0
      %v1272 = vmin.f32 %v1192, 6.0
      %v1273 = vmin.f32 %v1193, 6.0
      %v1274 = vmin.f32 %v1194, 6.0
      %v1275 = vmin.f32 %v1195, 6.0
      %v1276 = vmin.f32 %v1196, 6.0
      %v1277 = vmin.f32 %v1197, 6.0
      %v1278 = vmin.f32 %v1198, 6.0
      %v1279 = vmin.f32 %v1199, 6.0
      %v1280 = vmin.f32 %v1200, 6.0
      %v1281 = vmin.f32 %v1201, 6.0
      %v1282 = vmin.f32 %v1202, 6.0
      %v1283 = vmin.f32 %v1203, 6.0
      %v1284 = vmin.f32 %v1204, 6.0
      %v1285 = vmin.f32 %v1205, 6.0
      %v1286 = vmin.f32 %v1206, 6.0
      %v1287 = vmin.f32 %v1207, 6.0
      %v1288 = vmin.f32 %v1208, 6.0
      %v1289 = vmin.f32 %v1209, 6.0
      %v1290 = vmin.f32 %v1210, 6.0
      %v1291 = vmin.f32 %v1211, 6.0
      %v1292 = vmin.f32 %v1212, 6.0
      %v1293 = vmin.f32 %v1213, 6.0
      %v1294 = vmin.f32 %v1214, 6.0
      %v1295 = vmin.f32 %v1215, 6.0
      %v1296 = vmin.f32 %v1216, 6.0
      %v1297 = vmin.f32 %v1217, 6.0
      %v1298 = vmin.f32 %v1218, 6.0
      %v1299 = vmin.f32 %v1219, 6.0
      %v1300 = vmin.f32 %v1220, 6.0
      %v1301 = vmin.f32 %v1221, 6.0
      %v1302 = vmin.f32 %v1222, 6.0
      %v1303 = vmin.f32 %v1223, 6.0
      %v1304 = vmin.f32 %v1224, 6.0
      %v1305 = vmin.f32 %v1225, 6.0
      %v1306 = vmin.f32 %v1226, 6.0
      %v1307 = vmin.f32 %v1227, 6.0
      %v1308 = vmin.f32 %v1228, 6.0
      %v1309 = vmin.f32 %v1229, 6.0
      %v1310 = vmin.f32 %v1230, 6.0
      %v1311 = vmin.f32 %v1231, 6.0
      %v1312 = vmin.f32 %v1232, 6.0
      %v1313 = vmin.f32 %v1233, 6.0
      %v1314 = vmin.f32 %v1234, 6.0
      %v1315 = vmin.f32 %v1235, 6.0
      %v1316 = vmin.f32 %v1236, 6.0
      %v1317 = vmul.f32 %v679, %v1237
      %v1318 = vmul.f32 %v684, %v1238
      %v1319 = vmul.f32 %v689, %v1239
      %v1320 = vmul.f32 %v694, %v1240
      %v1321 = vmul.f32 %v699, %v1241
      %v1322 = vmul.f32 %v704, %v1242
      %v1323 = vmul.f32 %v709, %v1243
      %v1324 = vmul.f32 %v714, %v1244
      %v1325 = vmul.f32 %v719, %v1245
      %v1326 = vmul.f32 %v724, %v1246
      %v1327 = vmul.f32 %v729, %v1247
      %v1328 = vmul.f32 %v734, %v1248
      %v1329 = vmul.f32 %v739, %v1249
      %v1330 = vmul.f32 %v744, %v1250
      %v1331 = vmul.f32 %v749, %v1251
      %v1332 = vmul.f32 %v754, %v1252
      %v1333 = vmul.f32 %v759, %v1253
      %v1334 = vmul.f32 %v764, %v1254
      %v1335 = vmul.f32 %v769, %v1255
      %v1336 = vmul.f32 %v774, %v1256
      %v1337 = vmul.f32 %v779, %v1257
      %v1338 = vmul.f32 %v784, %v1258
      %v1339 = vmul.f32 %v789, %v1259
      %v1340 = vmul.f32 %v794, %v1260
      %v1341 = vmul.f32 %v799, %v1261
      %v1342 = vmul.f32 %v804, %v1262
      %v1343 = vmul.f32 %v809, %v1263
      %v1344 = vmul.f32 %v814, %v1264
      %v1345 = vmul.f32 %v819, %v1265
      %v1346 = vmul.f32 %v824, %v1266
      %v1347 = vmul.f32 %v829, %v1267
      %v1348 = vmul.f32 %v834, %v1268
      %v1349 = vmul.f32 %v839, %v1269
      %v1350 = vmul.f32 %v844, %v1270
      %v1351 = vmul.f32 %v849, %v1271
      %v1352 = vmul.f32 %v854, %v1272
      %v1353 = vmul.f32 %v859, %v1273
      %v1354 = vmul.f32 %v864, %v1274
      %v1355 = vmul.f32 %v869, %v1275
      %v1356 = vmul.f32 %v874, %v1276
      %v1357 = vmul.f32 %v879, %v1277
      %v1358 = vmul.f32 %v884, %v1278
      %v1359 = vmul.f32 %v889, %v1279
      %v1360 = vmul.f32 %v894, %v1280
      %v1361 = vmul.f32 %v899, %v1281
      %v1362 = vmul.f32 %v904, %v1282
      %v1363 = vmul.f32 %v909, %v1283
      %v1364 = vmul.f32 %v914, %v1284
      %v1365 = vmul.f32 %v919, %v1285
      %v1366 = vmul.f32 %v924, %v1286
      %v1367 = vmul.f32 %v929, %v1287
      %v1368 = vmul.f32 %v934, %v1288
      %v1369 = vmul.f32 %v939, %v1289
      %v1370 = vmul.f32 %v944, %v1290
      %v1371 = vmul.f32 %v949, %v1291
      %v1372 = vmul.f32 %v954, %v1292
      %v1373 = vmul.f32 %v959, %v1293
      %v1374 = vmul.f32 %v964, %v1294
      %v1375 = vmul.f32 %v969, %v1295
      %v1376 = vmul.f32 %v974, %v1296
      %v1377 = vmul.f32 %v979, %v1297
      %v1378 = vmul.f32 %v984, %v1298
      %v1379 = vmul.f32 %v989, %v1299
      %v1380 = vmul.f32 %v994, %v1300
      %v1381 = vmul.f32 %v999, %v1301
      %v1382 = vmul.f32 %v1004, %v1302
      %v1383 = vmul.f32 %v1009, %v1303
      %v1384 = vmul.f32 %v1014, %v1304
      %v1385 = vmul.f32 %v1019, %v1305
      %v1386 = vmul.f32 %v1024, %v1306
      %v1387 = vmul.f32 %v1029, %v1307
      %v1388 = vmul.f32 %v1034, %v1308
      %v1389 = vmul.f32 %v1039, %v1309
      %v1390 = vmul.f32 %v1044, %v1310
      %v1391 = vmul.f32 %v1049, %v1311
      %v1392 = vmul.f32 %v1054, %v1312
      %v1393 = vmul.f32 %v1059, %v1313
      %v1394 = vmul.f32 %v1064, %v1314
      %v1395 = vmul.f32 %v1069, %v1315
      %v1396 = vmul.f32 %v1074, %v1316
      %v1397 = vld [vmem:[%s3] sm:$0xff]
      %v1398 = vld [vmem:[%s3 + $0x8] sm:$0xff]
      %v1399 = vld [vmem:[%s3 + $0x10] sm:$0xff]
      %v1400 = vld [vmem:[%s3 + $0x18] sm:$0xff]
      %v1401 = vld [vmem:[%s4] sm:$0x1]
      %v1403 = vlaneseq
      %v1404 = vshrl.u32 %v1403, 7
      %v1405 = vsub.s32 0, %v1404
      %v1406 = vrot.slane %v1401, %v1405
      %vm1408 = vcmask 261120
      %v1410 = vsel %vm1408, %v1317, 0
      %v1413 = vsel %vm1408, %v1318, 0
      %v1416 = vsel %vm1408, %v1319, 0
      %v1419 = vsel %vm1408, %v1320, 0
      %v1422 = vsel %vm1408, %v1321, 0
      %v1425 = vsel %vm1408, %v1322, 0
      %v1428 = vsel %vm1408, %v1323, 0
      %v1431 = vsel %vm1408, %v1324, 0
      %v1434 = vsel %vm1408, %v1325, 0
      %v1437 = vsel %vm1408, %v1326, 0
      %v1440 = vsel %vm1408, %v1327, 0
      %v1443 = vsel %vm1408, %v1328, 0
      %v1446 = vsel %vm1408, %v1329, 0
      %v1449 = vsel %vm1408, %v1330, 0
      %v1452 = vsel %vm1408, %v1331, 0
      %v1455 = vsel %vm1408, %v1332, 0
      %v1458 = vsel %vm1408, %v1333, 0
      %v1461 = vsel %vm1408, %v1334, 0
      %v1464 = vsel %vm1408, %v1335, 0
      %v1467 = vsel %vm1408, %v1336, 0
      %v1470 = vsel %vm1408, %v1337, 0
      %v1473 = vsel %vm1408, %v1338, 0
      %v1476 = vsel %vm1408, %v1339, 0
      %v1479 = vsel %vm1408, %v1340, 0
      %v1482 = vsel %vm1408, %v1341, 0
      %v1485 = vsel %vm1408, %v1342, 0
      %v1488 = vsel %vm1408, %v1343, 0
      %v1491 = vsel %vm1408, %v1344, 0
      %v1494 = vsel %vm1408, %v1345, 0
      %v1497 = vsel %vm1408, %v1346, 0
      %v1500 = vsel %vm1408, %v1347, 0
      %v1503 = vsel %vm1408, %v1348, 0
      %v1506 = vsel %vm1408, %v1349, 0
      %v1509 = vsel %vm1408, %v1350, 0
      %v1512 = vsel %vm1408, %v1351, 0
      %v1515 = vsel %vm1408, %v1352, 0
      %v1518 = vsel %vm1408, %v1353, 0
      %v1521 = vsel %vm1408, %v1354, 0
      %v1524 = vsel %vm1408, %v1355, 0
      %v1527 = vsel %vm1408, %v1356, 0
      %v1530 = vsel %vm1408, %v1357, 0
      %v1533 = vsel %vm1408, %v1358, 0
      %v1536 = vsel %vm1408, %v1359, 0
      %v1539 = vsel %vm1408, %v1360, 0
      %v1542 = vsel %vm1408, %v1361, 0
      %v1545 = vsel %vm1408, %v1362, 0
      %v1548 = vsel %vm1408, %v1363, 0
      %v1551 = vsel %vm1408, %v1364, 0
      %v1554 = vsel %vm1408, %v1365, 0
      %v1557 = vsel %vm1408, %v1366, 0
      %v1560 = vsel %vm1408, %v1367, 0
      %v1563 = vsel %vm1408, %v1368, 0
      %v1566 = vsel %vm1408, %v1369, 0
      %v1569 = vsel %vm1408, %v1370, 0
      %v1572 = vsel %vm1408, %v1371, 0
      %v1575 = vsel %vm1408, %v1372, 0
      %v1578 = vsel %vm1408, %v1373, 0
      %v1581 = vsel %vm1408, %v1374, 0
      %v1584 = vsel %vm1408, %v1375, 0
      %v1587 = vsel %vm1408, %v1376, 0
      %v1590 = vsel %vm1408, %v1377, 0
      %v1593 = vsel %vm1408, %v1378, 0
      %v1596 = vsel %vm1408, %v1379, 0
      %v1599 = vsel %vm1408, %v1380, 0
      %v1602 = vsel %vm1408, %v1381, 0
      %v1605 = vsel %vm1408, %v1382, 0
      %v1608 = vsel %vm1408, %v1383, 0
      %v1611 = vsel %vm1408, %v1384, 0
      %v1614 = vsel %vm1408, %v1385, 0
      %v1617 = vsel %vm1408, %v1386, 0
      %v1620 = vsel %vm1408, %v1387, 0
      %v1623 = vsel %vm1408, %v1388, 0
      %v1626 = vsel %vm1408, %v1389, 0
      %v1629 = vsel %vm1408, %v1390, 0
      %v1632 = vsel %vm1408, %v1391, 0
      %v1635 = vsel %vm1408, %v1392, 0
      %v1638 = vsel %vm1408, %v1393, 0
      %v1641 = vsel %vm1408, %v1394, 0
      %v1644 = vsel %vm1408, %v1395, 0
      %v1647 = vsel %vm1408, %v1396, 0
      %1649 = vmatprep.subr.mxu0 0.0
      %1650 = vmatpush1.msra.mxu0 %v1397
      %1651 = vmatprep.subr.mxu0 0.0
      %1652 = vmatpush1.msra.mxu0 %v1398
      %1653 = vmatprep.subr.mxu0 0.0
      %1654 = vmatpush1.msra.mxu0 %v1399
      %1655 = vmatprep.subr.mxu0 0.0
      %1656 = vmatpush1.msra.mxu0 %v1400
      %1657 = vmatprep.subr.mxu0 0.0
      %1658 = vmatpush1.msra.mxu0 0.0
      %1659 = vmatprep.subr.mxu0 0.0
      %1660 = vmatpush1.msra.mxu0 0.0
      %1661 = vmatprep.subr.mxu0 0.0
      %1662 = vmatpush1.msra.mxu0 0.0
      %1663 = vmatprep.subr.mxu0 0.0
      %1664 = vmatpush1.msra.mxu0 0.0
      %1665 = vmatprep.subr.mxu0 0.0
      %1666 = vmatpush1.msra.mxu0 0.0
      %1667 = vmatprep.subr.mxu0 0.0
      %1668 = vmatpush1.msra.mxu0 0.0
      %1669 = vmatprep.subr.mxu0 0.0
      %1670 = vmatpush1.msra.mxu0 0.0
      %1671 = vmatprep.subr.mxu0 0.0
      %1672 = vmatpush1.msra.mxu0 0.0
      %1673 = vmatprep.subr.mxu0 0.0
      %1674 = vmatpush1.msra.mxu0 0.0
      %1675 = vmatprep.subr.mxu0 0.0
      %1676 = vmatpush1.msra.mxu0 0.0
      %1677 = vmatprep.subr.mxu0 0.0
      %1678 = vmatpush1.msra.mxu0 0.0
      %1679 = vmatprep.subr.mxu0 0.0
      %1680 = vmatpush1.msra.mxu0 0.0
      %1681 = vmatprep.subr.mxu0 0.0
      %1682 = vmatpush1.msra.mxu0 0.0
      %1683 = vmatprep.subr.mxu0 0.0
      %1684 = vmatpush1.msra.mxu0 0.0
      %1685 = vmatprep.subr.mxu0 0.0
      %1686 = vmatpush1.msra.mxu0 0.0
      %1687 = vmatprep.subr.mxu0 0.0
      %1688 = vmatpush1.msra.mxu0 0.0
      %1689 = vmatprep.subr.mxu0 0.0
      %1690 = vmatpush1.msra.mxu0 0.0
      %1691 = vmatprep.subr.mxu0 0.0
      %1692 = vmatpush1.msra.mxu0 0.0
      %1693 = vmatprep.subr.mxu0 0.0
      %1694 = vmatpush1.msra.mxu0 0.0
      %1695 = vmatprep.subr.mxu0 0.0
      %1696 = vmatpush1.msra.mxu0 0.0
      %1697 = vmatprep.subr.mxu0 0.0
      %1698 = vmatpush1.msra.mxu0 0.0
      %1699 = vmatprep.subr.mxu0 0.0
      %1700 = vmatpush1.msra.mxu0 0.0
      %1701 = vmatprep.subr.mxu0 0.0
      %1702 = vmatpush1.msra.mxu0 0.0
      %1703 = vmatprep.subr.mxu0 0.0
      %1704 = vmatpush1.msra.mxu0 0.0
      %1705 = vmatprep.subr.mxu0 0.0
      %1706 = vmatpush1.msra.mxu0 0.0
      %1707 = vmatprep.subr.mxu0 0.0
      %1708 = vmatpush1.msra.mxu0 0.0
      %1709 = vmatprep.subr.mxu0 0.0
      %1710 = vmatpush1.msra.mxu0 0.0
      %1711 = vmatprep.subr.mxu0 0.0
      %1712 = vmatpush1.msra.mxu0 0.0
      %1713 = vmatprep.mubr.f32.mxu0 0.0
      %1714 = vmatmul.mubr.f32.gmra.mrb[0].mxu0 %v1410
      %v1715 = vpop.f32.mrb[0].mxu0
      %v1716 = vadd.f32 %v1406, %v1715
      %v1717 = vpop.f32.mrb[0].mxu0
      %1718 = vmatprep.mubr.f32.mxu0 0.0
      %1719 = vmatmul.mubr.f32.gmra.mrb[0].mxu0 %v1413
      %v1720 = vpop.f32.mrb[0].mxu0
      %v1721 = vadd.f32 %v1406, %v1720
      %v1722 = vpop.f32.mrb[0].mxu0
      %1723 = vmatprep.mubr.f32.mxu0 0.0
      %1724 = vmatmul.mubr.f32.gmra.mrb[0].mxu0 %v1416
      %v1725 = vpop.f32.mrb[0].mxu0
      %v1726 = vadd.f32 %v1406, %v1725
      %v1727 = vpop.f32.mrb[0].mxu0
      %1728 = vmatprep.mubr.f32.mxu0 0.0
      %1729 = vmatmul.mubr.f32.gmra.mrb[0].mxu0 %v1419
      %v1730 = vpop.f32.mrb[0].mxu0
      %v1731 = vadd.f32 %v1406, %v1730
      %v1732 = vpop.f32.mrb[0].mxu0
      %1733 = vmatprep.mubr.f32.mxu0 0.0
      %1734 = vmatmul.mubr.f32.gmra.mrb[0].mxu0 %v1422
      %v1735 = vpop.f32.mrb[0].mxu0
      %v1736 = vadd.f32 %v1406, %v1735
      %v1737 = vpop.f32.mrb[0].mxu0
      %1738 = vmatprep.mubr.f32.mxu0 0.0
      %1739 = vmatmul.mubr.f32.gmra.mrb[0].mxu0 %v1425
      %v1740 = vpop.f32.mrb[0].mxu0
      %v1741 = vadd.f32 %v1406, %v1740
      %v1742 = vpop.f32.mrb[0].mxu0
      %1743 = vmatprep.mubr.f32.mxu0 0.0
      %1744 = vmatmul.mubr.f32.gmra.mrb[0].mxu0 %v1428
      %v1745 = vpop.f32.mrb[0].mxu0
      %v1746 = vadd.f32 %v1406, %v1745
      %v1747 = vpop.f32.mrb[0].mxu0
      %1748 = vmatprep.mubr.f32.mxu0 0.0
      %1749 = vmatmul.mubr.f32.gmra.mrb[0].mxu0 %v1431
      %v1750 = vpop.f32.mrb[0].mxu0
      %v1751 = vadd.f32 %v1406, %v1750
      %v1752 = vpop.f32.mrb[0].mxu0
      %1753 = vmatprep.mubr.f32.mxu0 0.0
      %1754 = vmatmul.mubr.f32.gmra.mrb[0].mxu0 %v1434
      %v1755 = vpop.f32.mrb[0].mxu0
      %v1756 = vadd.f32 %v1406, %v1755
      %v1757 = vpop.f32.mrb[0].mxu0
      %1758 = vmatprep.mubr.f32.mxu0 0.0
      %1759 = vmatmul.mubr.f32.gmra.mrb[0].mxu0 %v1437
      %v1760 = vpop.f32.mrb[0].mxu0
      %v1761 = vadd.f32 %v1406, %v1760
      %v1762 = vpop.f32.mrb[0].mxu0
      %1763 = vmatprep.mubr.f32.mxu0 0.0
      %1764 = vmatmul.mubr.f32.gmra.mrb[0].mxu0 %v1440
      %v1765 = vpop.f32.mrb[0].mxu0
      %v1766 = vadd.f32 %v1406, %v1765
      %v1767 = vpop.f32.mrb[0].mxu0
      %1768 = vmatprep.mubr.f32.mxu0 0.0
      %1769 = vmatmul.mubr.f32.gmra.mrb[0].mxu0 %v1443
      %v1770 = vpop.f32.mrb[0].mxu0
      %v1771 = vadd.f32 %v1406, %v1770
      %v1772 = vpop.f32.mrb[0].mxu0
      %1773 = vmatprep.mubr.f32.mxu0 0.0
      %1774 = vmatmul.mubr.f32.gmra.mrb[0].mxu0 %v1446
      %v1775 = vpop.f32.mrb[0].mxu0
      %v1776 = vadd.f32 %v1406, %v1775
      %v1777 = vpop.f32.mrb[0].mxu0
      %1778 = vmatprep.mubr.f32.mxu0 0.0
      %1779 = vmatmul.mubr.f32.gmra.mrb[0].mxu0 %v1449
      %v1780 = vpop.f32.mrb[0].mxu0
      %v1781 = vadd.f32 %v1406, %v1780
      %v1782 = vpop.f32.mrb[0].mxu0
      %1783 = vmatprep.mubr.f32.mxu0 0.0
      %1784 = vmatmul.mubr.f32.gmra.mrb[0].mxu0 %v1452
      %v1785 = vpop.f32.mrb[0].mxu0
      %v1786 = vadd.f32 %v1406, %v1785
      %v1787 = vpop.f32.mrb[0].mxu0
      %1788 = vmatprep.mubr.f32.mxu0 0.0
      %1789 = vmatmul.mubr.f32.gmra.mrb[0].mxu0 %v1455
      %v1790 = vpop.f32.mrb[0].mxu0
      %v1791 = vadd.f32 %v1406, %v1790
      %v1792 = vpop.f32.mrb[0].mxu0
      %1793 = vmatprep.mubr.f32.mxu0 0.0
      %1794 = vmatmul.mubr.f32.gmra.mrb[0].mxu0 %v1458
      %v1795 = vpop.f32.mrb[0].mxu0
      %v1796 = vadd.f32 %v1406, %v1795
      %v1797 = vpop.f32.mrb[0].mxu0
      %1798 = vmatprep.mubr.f32.mxu0 0.0
      %1799 = vmatmul.mubr.f32.gmra.mrb[0].mxu0 %v1461
      %v1800 = vpop.f32.mrb[0].mxu0
      %v1801 = vadd.f32 %v1406, %v1800
      %v1802 = vpop.f32.mrb[0].mxu0
      %1803 = vmatprep.mubr.f32.mxu0 0.0
      %1804 = vmatmul.mubr.f32.gmra.mrb[0].mxu0 %v1464
      %v1805 = vpop.f32.mrb[0].mxu0
      %v1806 = vadd.f32 %v1406, %v1805
      %v1807 = vpop.f32.mrb[0].mxu0
      %1808 = vmatprep.mubr.f32.mxu0 0.0
      %1809 = vmatmul.mubr.f32.gmra.mrb[0].mxu0 %v1467
      %v1810 = vpop.f32.mrb[0].mxu0
      %v1811 = vadd.f32 %v1406, %v1810
      %v1812 = vpop.f32.mrb[0].mxu0
      %1813 = vmatprep.mubr.f32.mxu0 0.0
      %1814 = vmatmul.mubr.f32.gmra.mrb[0].mxu0 %v1470
      %v1815 = vpop.f32.mrb[0].mxu0
      %v1816 = vadd.f32 %v1406, %v1815
      %v1817 = vpop.f32.mrb[0].mxu0
      %1818 = vmatprep.mubr.f32.mxu0 0.0
      %1819 = vmatmul.mubr.f32.gmra.mrb[0].mxu0 %v1473
      %v1820 = vpop.f32.mrb[0].mxu0
      %v1821 = vadd.f32 %v1406, %v1820
      %v1822 = vpop.f32.mrb[0].mxu0
      %1823 = vmatprep.mubr.f32.mxu0 0.0
      %1824 = vmatmul.mubr.f32.gmra.mrb[0].mxu0 %v1476
      %v1825 = vpop.f32.mrb[0].mxu0
      %v1826 = vadd.f32 %v1406, %v1825
      %v1827 = vpop.f32.mrb[0].mxu0
      %1828 = vmatprep.mubr.f32.mxu0 0.0
      %1829 = vmatmul.mubr.f32.gmra.mrb[0].mxu0 %v1479
      %v1830 = vpop.f32.mrb[0].mxu0
      %v1831 = vadd.f32 %v1406, %v1830
      %v1832 = vpop.f32.mrb[0].mxu0
      %1833 = vmatprep.mubr.f32.mxu0 0.0
      %1834 = vmatmul.mubr.f32.gmra.mrb[0].mxu0 %v1482
      %v1835 = vpop.f32.mrb[0].mxu0
      %v1836 = vadd.f32 %v1406, %v1835
      %v1837 = vpop.f32.mrb[0].mxu0
      %1838 = vmatprep.mubr.f32.mxu0 0.0
      %1839 = vmatmul.mubr.f32.gmra.mrb[0].mxu0 %v1485
      %v1840 = vpop.f32.mrb[0].mxu0
      %v1841 = vadd.f32 %v1406, %v1840
      %v1842 = vpop.f32.mrb[0].mxu0
      %1843 = vmatprep.mubr.f32.mxu0 0.0
      %1844 = vmatmul.mubr.f32.gmra.mrb[0].mxu0 %v1488
      %v1845 = vpop.f32.mrb[0].mxu0
      %v1846 = vadd.f32 %v1406, %v1845
      %v1847 = vpop.f32.mrb[0].mxu0
      %1848 = vmatprep.mubr.f32.mxu0 0.0
      %1849 = vmatmul.mubr.f32.gmra.mrb[0].mxu0 %v1491
      %v1850 = vpop.f32.mrb[0].mxu0
      %v1851 = vadd.f32 %v1406, %v1850
      %v1852 = vpop.f32.mrb[0].mxu0
      %1853 = vmatprep.mubr.f32.mxu0 0.0
      %1854 = vmatmul.mubr.f32.gmra.mrb[0].mxu0 %v1494
      %v1855 = vpop.f32.mrb[0].mxu0
      %v1856 = vadd.f32 %v1406, %v1855
      %v1857 = vpop.f32.mrb[0].mxu0
      %1858 = vmatprep.mubr.f32.mxu0 0.0
      %1859 = vmatmul.mubr.f32.gmra.mrb[0].mxu0 %v1497
      %v1860 = vpop.f32.mrb[0].mxu0
      %v1861 = vadd.f32 %v1406, %v1860
      %v1862 = vpop.f32.mrb[0].mxu0
      %1863 = vmatprep.mubr.f32.mxu0 0.0
      %1864 = vmatmul.mubr.f32.gmra.mrb[0].mxu0 %v1500
      %v1865 = vpop.f32.mrb[0].mxu0
      %v1866 = vadd.f32 %v1406, %v1865
      %v1867 = vpop.f32.mrb[0].mxu0
      %1868 = vmatprep.mubr.f32.mxu0 0.0
      %1869 = vmatmul.mubr.f32.gmra.mrb[0].mxu0 %v1503
      %v1870 = vpop.f32.mrb[0].mxu0
      %v1871 = vadd.f32 %v1406, %v1870
      %v1872 = vpop.f32.mrb[0].mxu0
      %1873 = vmatprep.mubr.f32.mxu0 0.0
      %1874 = vmatmul.mubr.f32.gmra.mrb[0].mxu0 %v1506
      %v1875 = vpop.f32.mrb[0].mxu0
      %v1876 = vadd.f32 %v1406, %v1875
      %v1877 = vpop.f32.mrb[0].mxu0
      %1878 = vmatprep.mubr.f32.mxu0 0.0
      %1879 = vmatmul.mubr.f32.gmra.mrb[0].mxu0 %v1509
      %v1880 = vpop.f32.mrb[0].mxu0
      %v1881 = vadd.f32 %v1406, %v1880
      %v1882 = vpop.f32.mrb[0].mxu0
      %1883 = vmatprep.mubr.f32.mxu0 0.0
      %1884 = vmatmul.mubr.f32.gmra.mrb[0].mxu0 %v1512
      %v1885 = vpop.f32.mrb[0].mxu0
      %v1886 = vadd.f32 %v1406, %v1885
      %v1887 = vpop.f32.mrb[0].mxu0
      %1888 = vmatprep.mubr.f32.mxu0 0.0
      %1889 = vmatmul.mubr.f32.gmra.mrb[0].mxu0 %v1515
      %v1890 = vpop.f32.mrb[0].mxu0
      %v1891 = vadd.f32 %v1406, %v1890
      %v1892 = vpop.f32.mrb[0].mxu0
      %1893 = vmatprep.mubr.f32.mxu0 0.0
      %1894 = vmatmul.mubr.f32.gmra.mrb[0].mxu0 %v1518
      %v1895 = vpop.f32.mrb[0].mxu0
      %v1896 = vadd.f32 %v1406, %v1895
      %v1897 = vpop.f32.mrb[0].mxu0
      %1898 = vmatprep.mubr.f32.mxu0 0.0
      %1899 = vmatmul.mubr.f32.gmra.mrb[0].mxu0 %v1521
      %v1900 = vpop.f32.mrb[0].mxu0
      %v1901 = vadd.f32 %v1406, %v1900
      %v1902 = vpop.f32.mrb[0].mxu0
      %1903 = vmatprep.mubr.f32.mxu0 0.0
      %1904 = vmatmul.mubr.f32.gmra.mrb[0].mxu0 %v1524
      %v1905 = vpop.f32.mrb[0].mxu0
      %v1906 = vadd.f32 %v1406, %v1905
      %v1907 = vpop.f32.mrb[0].mxu0
      %1908 = vmatprep.mubr.f32.mxu0 0.0
      %1909 = vmatmul.mubr.f32.gmra.mrb[0].mxu0 %v1527
      %v1910 = vpop.f32.mrb[0].mxu0
      %v1911 = vadd.f32 %v1406, %v1910
      %v1912 = vpop.f32.mrb[0].mxu0
      %1913 = vmatprep.mubr.f32.mxu0 0.0
      %1914 = vmatmul.mubr.f32.gmra.mrb[0].mxu0 %v1530
      %v1915 = vpop.f32.mrb[0].mxu0
      %v1916 = vadd.f32 %v1406, %v1915
      %v1917 = vpop.f32.mrb[0].mxu0
      %1918 = vmatprep.mubr.f32.mxu0 0.0
      %1919 = vmatmul.mubr.f32.gmra.mrb[0].mxu0 %v1533
      %v1920 = vpop.f32.mrb[0].mxu0
      %v1921 = vadd.f32 %v1406, %v1920
      %v1922 = vpop.f32.mrb[0].mxu0
      %1923 = vmatprep.mubr.f32.mxu0 0.0
      %1924 = vmatmul.mubr.f32.gmra.mrb[0].mxu0 %v1536
      %v1925 = vpop.f32.mrb[0].mxu0
      %v1926 = vadd.f32 %v1406, %v1925
      %v1927 = vpop.f32.mrb[0].mxu0
      %1928 = vmatprep.mubr.f32.mxu0 0.0
      %1929 = vmatmul.mubr.f32.gmra.mrb[0].mxu0 %v1539
      %v1930 = vpop.f32.mrb[0].mxu0
      %v1931 = vadd.f32 %v1406, %v1930
      %v1932 = vpop.f32.mrb[0].mxu0
      %1933 = vmatprep.mubr.f32.mxu0 0.0
      %1934 = vmatmul.mubr.f32.gmra.mrb[0].mxu0 %v1542
      %v1935 = vpop.f32.mrb[0].mxu0
      %v1936 = vadd.f32 %v1406, %v1935
      %v1937 = vpop.f32.mrb[0].mxu0
      %1938 = vmatprep.mubr.f32.mxu0 0.0
      %1939 = vmatmul.mubr.f32.gmra.mrb[0].mxu0 %v1545
      %v1940 = vpop.f32.mrb[0].mxu0
      %v1941 = vadd.f32 %v1406, %v1940
      %v1942 = vpop.f32.mrb[0].mxu0
      %1943 = vmatprep.mubr.f32.mxu0 0.0
      %1944 = vmatmul.mubr.f32.gmra.mrb[0].mxu0 %v1548
      %v1945 = vpop.f32.mrb[0].mxu0
      %v1946 = vadd.f32 %v1406, %v1945
      %v1947 = vpop.f32.mrb[0].mxu0
      %1948 = vmatprep.mubr.f32.mxu0 0.0
      %1949 = vmatmul.mubr.f32.gmra.mrb[0].mxu0 %v1551
      %v1950 = vpop.f32.mrb[0].mxu0
      %v1951 = vadd.f32 %v1406, %v1950
      %v1952 = vpop.f32.mrb[0].mxu0
      %1953 = vmatprep.mubr.f32.mxu0 0.0
      %1954 = vmatmul.mubr.f32.gmra.mrb[0].mxu0 %v1554
      %v1955 = vpop.f32.mrb[0].mxu0
      %v1956 = vadd.f32 %v1406, %v1955
      %v1957 = vpop.f32.mrb[0].mxu0
      %1958 = vmatprep.mubr.f32.mxu0 0.0
      %1959 = vmatmul.mubr.f32.gmra.mrb[0].mxu0 %v1557
      %v1960 = vpop.f32.mrb[0].mxu0
      %v1961 = vadd.f32 %v1406, %v1960
      %v1962 = vpop.f32.mrb[0].mxu0
      %1963 = vmatprep.mubr.f32.mxu0 0.0
      %1964 = vmatmul.mubr.f32.gmra.mrb[0].mxu0 %v1560
      %v1965 = vpop.f32.mrb[0].mxu0
      %v1966 = vadd.f32 %v1406, %v1965
      %v1967 = vpop.f32.mrb[0].mxu0
      %1968 = vmatprep.mubr.f32.mxu0 0.0
      %1969 = vmatmul.mubr.f32.gmra.mrb[0].mxu0 %v1563
      %v1970 = vpop.f32.mrb[0].mxu0
      %v1971 = vadd.f32 %v1406, %v1970
      %v1972 = vpop.f32.mrb[0].mxu0
      %1973 = vmatprep.mubr.f32.mxu0 0.0
      %1974 = vmatmul.mubr.f32.gmra.mrb[0].mxu0 %v1566
      %v1975 = vpop.f32.mrb[0].mxu0
      %v1976 = vadd.f32 %v1406, %v1975
      %v1977 = vpop.f32.mrb[0].mxu0
      %1978 = vmatprep.mubr.f32.mxu0 0.0
      %1979 = vmatmul.mubr.f32.gmra.mrb[0].mxu0 %v1569
      %v1980 = vpop.f32.mrb[0].mxu0
      %v1981 = vadd.f32 %v1406, %v1980
      %v1982 = vpop.f32.mrb[0].mxu0
      %1983 = vmatprep.mubr.f32.mxu0 0.0
      %1984 = vmatmul.mubr.f32.gmra.mrb[0].mxu0 %v1572
      %v1985 = vpop.f32.mrb[0].mxu0
      %v1986 = vadd.f32 %v1406, %v1985
      %v1987 = vpop.f32.mrb[0].mxu0
      %1988 = vmatprep.mubr.f32.mxu0 0.0
      %1989 = vmatmul.mubr.f32.gmra.mrb[0].mxu0 %v1575
      %v1990 = vpop.f32.mrb[0].mxu0
      %v1991 = vadd.f32 %v1406, %v1990
      %v1992 = vpop.f32.mrb[0].mxu0
      %1993 = vmatprep.mubr.f32.mxu0 0.0
      %1994 = vmatmul.mubr.f32.gmra.mrb[0].mxu0 %v1578
      %v1995 = vpop.f32.mrb[0].mxu0
      %v1996 = vadd.f32 %v1406, %v1995
      %v1997 = vpop.f32.mrb[0].mxu0
      %1998 = vmatprep.mubr.f32.mxu0 0.0
      %1999 = vmatmul.mubr.f32.gmra.mrb[0].mxu0 %v1581
      %v2000 = vpop.f32.mrb[0].mxu0
      %v2001 = vadd.f32 %v1406, %v2000
      %v2002 = vpop.f32.mrb[0].mxu0
      %2003 = vmatprep.mubr.f32.mxu0 0.0
      %2004 = vmatmul.mubr.f32.gmra.mrb[0].mxu0 %v1584
      %v2005 = vpop.f32.mrb[0].mxu0
      %v2006 = vadd.f32 %v1406, %v2005
      %v2007 = vpop.f32.mrb[0].mxu0
      %2008 = vmatprep.mubr.f32.mxu0 0.0
      %2009 = vmatmul.mubr.f32.gmra.mrb[0].mxu0 %v1587
      %v2010 = vpop.f32.mrb[0].mxu0
      %v2011 = vadd.f32 %v1406, %v2010
      %v2012 = vpop.f32.mrb[0].mxu0
      %2013 = vmatprep.mubr.f32.mxu0 0.0
      %2014 = vmatmul.mubr.f32.gmra.mrb[0].mxu0 %v1590
      %v2015 = vpop.f32.mrb[0].mxu0
      %v2016 = vadd.f32 %v1406, %v2015
      %v2017 = vpop.f32.mrb[0].mxu0
      %2018 = vmatprep.mubr.f32.mxu0 0.0
      %2019 = vmatmul.mubr.f32.gmra.mrb[0].mxu0 %v1593
      %v2020 = vpop.f32.mrb[0].mxu0
      %v2021 = vadd.f32 %v1406, %v2020
      %v2022 = vpop.f32.mrb[0].mxu0
      %2023 = vmatprep.mubr.f32.mxu0 0.0
      %2024 = vmatmul.mubr.f32.gmra.mrb[0].mxu0 %v1596
      %v2025 = vpop.f32.mrb[0].mxu0
      %v2026 = vadd.f32 %v1406, %v2025
      %v2027 = vpop.f32.mrb[0].mxu0
      %2028 = vmatprep.mubr.f32.mxu0 0.0
      %2029 = vmatmul.mubr.f32.gmra.mrb[0].mxu0 %v1599
      %v2030 = vpop.f32.mrb[0].mxu0
      %v2031 = vadd.f32 %v1406, %v2030
      %v2032 = vpop.f32.mrb[0].mxu0
      %2033 = vmatprep.mubr.f32.mxu0 0.0
      %2034 = vmatmul.mubr.f32.gmra.mrb[0].mxu0 %v1602
      %v2035 = vpop.f32.mrb[0].mxu0
      %v2036 = vadd.f32 %v1406, %v2035
      %v2037 = vpop.f32.mrb[0].mxu0
      %2038 = vmatprep.mubr.f32.mxu0 0.0
      %2039 = vmatmul.mubr.f32.gmra.mrb[0].mxu0 %v1605
      %v2040 = vpop.f32.mrb[0].mxu0
      %v2041 = vadd.f32 %v1406, %v2040
      %v2042 = vpop.f32.mrb[0].mxu0
      %2043 = vmatprep.mubr.f32.mxu0 0.0
      %2044 = vmatmul.mubr.f32.gmra.mrb[0].mxu0 %v1608
      %v2045 = vpop.f32.mrb[0].mxu0
      %v2046 = vadd.f32 %v1406, %v2045
      %v2047 = vpop.f32.mrb[0].mxu0
      %2048 = vmatprep.mubr.f32.mxu0 0.0
      %2049 = vmatmul.mubr.f32.gmra.mrb[0].mxu0 %v1611
      %v2050 = vpop.f32.mrb[0].mxu0
      %v2051 = vadd.f32 %v1406, %v2050
      %v2052 = vpop.f32.mrb[0].mxu0
      %2053 = vmatprep.mubr.f32.mxu0 0.0
      %2054 = vmatmul.mubr.f32.gmra.mrb[0].mxu0 %v1614
      %v2055 = vpop.f32.mrb[0].mxu0
      %v2056 = vadd.f32 %v1406, %v2055
      %v2057 = vpop.f32.mrb[0].mxu0
      %2058 = vmatprep.mubr.f32.mxu0 0.0
      %2059 = vmatmul.mubr.f32.gmra.mrb[0].mxu0 %v1617
      %v2060 = vpop.f32.mrb[0].mxu0
      %v2061 = vadd.f32 %v1406, %v2060
      %v2062 = vpop.f32.mrb[0].mxu0
      %2063 = vmatprep.mubr.f32.mxu0 0.0
      %2064 = vmatmul.mubr.f32.gmra.mrb[0].mxu0 %v1620
      %v2065 = vpop.f32.mrb[0].mxu0
      %v2066 = vadd.f32 %v1406, %v2065
      %v2067 = vpop.f32.mrb[0].mxu0
      %2068 = vmatprep.mubr.f32.mxu0 0.0
      %2069 = vmatmul.mubr.f32.gmra.mrb[0].mxu0 %v1623
      %v2070 = vpop.f32.mrb[0].mxu0
      %v2071 = vadd.f32 %v1406, %v2070
      %v2072 = vpop.f32.mrb[0].mxu0
      %2073 = vmatprep.mubr.f32.mxu0 0.0
      %2074 = vmatmul.mubr.f32.gmra.mrb[0].mxu0 %v1626
      %v2075 = vpop.f32.mrb[0].mxu0
      %v2076 = vadd.f32 %v1406, %v2075
      %v2077 = vpop.f32.mrb[0].mxu0
      %2078 = vmatprep.mubr.f32.mxu0 0.0
      %2079 = vmatmul.mubr.f32.gmra.mrb[0].mxu0 %v1629
      %v2080 = vpop.f32.mrb[0].mxu0
      %v2081 = vadd.f32 %v1406, %v2080
      %v2082 = vpop.f32.mrb[0].mxu0
      %2083 = vmatprep.mubr.f32.mxu0 0.0
      %2084 = vmatmul.mubr.f32.gmra.mrb[0].mxu0 %v1632
      %v2085 = vpop.f32.mrb[0].mxu0
      %v2086 = vadd.f32 %v1406, %v2085
      %v2087 = vpop.f32.mrb[0].mxu0
      %2088 = vmatprep.mubr.f32.mxu0 0.0
      %2089 = vmatmul.mubr.f32.gmra.mrb[0].mxu0 %v1635
      %v2090 = vpop.f32.mrb[0].mxu0
      %v2091 = vadd.f32 %v1406, %v2090
      %v2092 = vpop.f32.mrb[0].mxu0
      %2093 = vmatprep.mubr.f32.mxu0 0.0
      %2094 = vmatmul.mubr.f32.gmra.mrb[0].mxu0 %v1638
      %v2095 = vpop.f32.mrb[0].mxu0
      %v2096 = vadd.f32 %v1406, %v2095
      %v2097 = vpop.f32.mrb[0].mxu0
      %2098 = vmatprep.mubr.f32.mxu0 0.0
      %2099 = vmatmul.mubr.f32.gmra.mrb[0].mxu0 %v1641
      %v2100 = vpop.f32.mrb[0].mxu0
      %v2101 = vadd.f32 %v1406, %v2100
      %v2102 = vpop.f32.mrb[0].mxu0
      %2103 = vmatprep.mubr.f32.mxu0 0.0
      %2104 = vmatmul.mubr.f32.gmra.mrb[0].mxu0 %v1644
      %v2105 = vpop.f32.mrb[0].mxu0
      %v2106 = vadd.f32 %v1406, %v2105
      %v2107 = vpop.f32.mrb[0].mxu0
      %2108 = vmatprep.mubr.f32.mxu0 0.0
      %2109 = vmatmul.mubr.f32.gmra.mrb[0].mxu0 %v1647
      %v2110 = vpop.f32.mrb[0].mxu0
      %v2111 = vadd.f32 %v1406, %v2110
      %v2112 = vpop.f32.mrb[0].mxu0
      %2113 = vdwg.mxu0
      %v2114 = vadd.f32 %v1716, 3.0
      %v2115 = vadd.f32 %v1721, 3.0
      %v2116 = vadd.f32 %v1726, 3.0
      %v2117 = vadd.f32 %v1731, 3.0
      %v2118 = vadd.f32 %v1736, 3.0
      %v2119 = vadd.f32 %v1741, 3.0
      %v2120 = vadd.f32 %v1746, 3.0
      %v2121 = vadd.f32 %v1751, 3.0
      %v2122 = vadd.f32 %v1756, 3.0
      %v2123 = vadd.f32 %v1761, 3.0
      %v2124 = vadd.f32 %v1766, 3.0
      %v2125 = vadd.f32 %v1771, 3.0
      %v2126 = vadd.f32 %v1776, 3.0
      %v2127 = vadd.f32 %v1781, 3.0
      %v2128 = vadd.f32 %v1786, 3.0
      %v2129 = vadd.f32 %v1791, 3.0
      %v2130 = vadd.f32 %v1796, 3.0
      %v2131 = vadd.f32 %v1801, 3.0
      %v2132 = vadd.f32 %v1806, 3.0
      %v2133 = vadd.f32 %v1811, 3.0
      %v2134 = vadd.f32 %v1816, 3.0
      %v2135 = vadd.f32 %v1821, 3.0
      %v2136 = vadd.f32 %v1826, 3.0
      %v2137 = vadd.f32 %v1831, 3.0
      %v2138 = vadd.f32 %v1836, 3.0
      %v2139 = vadd.f32 %v1841, 3.0
      %v2140 = vadd.f32 %v1846, 3.0
      %v2141 = vadd.f32 %v1851, 3.0
      %v2142 = vadd.f32 %v1856, 3.0
      %v2143 = vadd.f32 %v1861, 3.0
      %v2144 = vadd.f32 %v1866, 3.0
      %v2145 = vadd.f32 %v1871, 3.0
      %v2146 = vadd.f32 %v1876, 3.0
      %v2147 = vadd.f32 %v1881, 3.0
      %v2148 = vadd.f32 %v1886, 3.0
      %v2149 = vadd.f32 %v1891, 3.0
      %v2150 = vadd.f32 %v1896, 3.0
      %v2151 = vadd.f32 %v1901, 3.0
      %v2152 = vadd.f32 %v1906, 3.0
      %v2153 = vadd.f32 %v1911, 3.0
      %v2154 = vadd.f32 %v1916, 3.0
      %v2155 = vadd.f32 %v1921, 3.0
      %v2156 = vadd.f32 %v1926, 3.0
      %v2157 = vadd.f32 %v1931, 3.0
      %v2158 = vadd.f32 %v1936, 3.0
      %v2159 = vadd.f32 %v1941, 3.0
      %v2160 = vadd.f32 %v1946, 3.0
      %v2161 = vadd.f32 %v1951, 3.0
      %v2162 = vadd.f32 %v1956, 3.0
      %v2163 = vadd.f32 %v1961, 3.0
      %v2164 = vadd.f32 %v1966, 3.0
      %v2165 = vadd.f32 %v1971, 3.0
      %v2166 = vadd.f32 %v1976, 3.0
      %v2167 = vadd.f32 %v1981, 3.0
      %v2168 = vadd.f32 %v1986, 3.0
      %v2169 = vadd.f32 %v1991, 3.0
      %v2170 = vadd.f32 %v1996, 3.0
      %v2171 = vadd.f32 %v2001, 3.0
      %v2172 = vadd.f32 %v2006, 3.0
      %v2173 = vadd.f32 %v2011, 3.0
      %v2174 = vadd.f32 %v2016, 3.0
      %v2175 = vadd.f32 %v2021, 3.0
      %v2176 = vadd.f32 %v2026, 3.0
      %v2177 = vadd.f32 %v2031, 3.0
      %v2178 = vadd.f32 %v2036, 3.0
      %v2179 = vadd.f32 %v2041, 3.0
      %v2180 = vadd.f32 %v2046, 3.0
      %v2181 = vadd.f32 %v2051, 3.0
      %v2182 = vadd.f32 %v2056, 3.0
      %v2183 = vadd.f32 %v2061, 3.0
      %v2184 = vadd.f32 %v2066, 3.0
      %v2185 = vadd.f32 %v2071, 3.0
      %v2186 = vadd.f32 %v2076, 3.0
      %v2187 = vadd.f32 %v2081, 3.0
      %v2188 = vadd.f32 %v2086, 3.0
      %v2189 = vadd.f32 %v2091, 3.0
      %v2190 = vadd.f32 %v2096, 3.0
      %v2191 = vadd.f32 %v2101, 3.0
      %v2192 = vadd.f32 %v2106, 3.0
      %v2193 = vadd.f32 %v2111, 3.0
      %v2194 = vmax.f32 %v2114, 0.0
      %v2195 = vmax.f32 %v2115, 0.0
      %v2196 = vmax.f32 %v2116, 0.0
      %v2197 = vmax.f32 %v2117, 0.0
      %v2198 = vmax.f32 %v2118, 0.0
      %v2199 = vmax.f32 %v2119, 0.0
      %v2200 = vmax.f32 %v2120, 0.0
      %v2201 = vmax.f32 %v2121, 0.0
      %v2202 = vmax.f32 %v2122, 0.0
      %v2203 = vmax.f32 %v2123, 0.0
      %v2204 = vmax.f32 %v2124, 0.0
      %v2205 = vmax.f32 %v2125, 0.0
      %v2206 = vmax.f32 %v2126, 0.0
      %v2207 = vmax.f32 %v2127, 0.0
      %v2208 = vmax.f32 %v2128, 0.0
      %v2209 = vmax.f32 %v2129, 0.0
      %v2210 = vmax.f32 %v2130, 0.0
      %v2211 = vmax.f32 %v2131, 0.0
      %v2212 = vmax.f32 %v2132, 0.0
      %v2213 = vmax.f32 %v2133, 0.0
      %v2214 = vmax.f32 %v2134, 0.0
      %v2215 = vmax.f32 %v2135, 0.0
      %v2216 = vmax.f32 %v2136, 0.0
      %v2217 = vmax.f32 %v2137, 0.0
      %v2218 = vmax.f32 %v2138, 0.0
      %v2219 = vmax.f32 %v2139, 0.0
      %v2220 = vmax.f32 %v2140, 0.0
      %v2221 = vmax.f32 %v2141, 0.0
      %v2222 = vmax.f32 %v2142, 0.0
      %v2223 = vmax.f32 %v2143, 0.0
      %v2224 = vmax.f32 %v2144, 0.0
      %v2225 = vmax.f32 %v2145, 0.0
      %v2226 = vmax.f32 %v2146, 0.0
      %v2227 = vmax.f32 %v2147, 0.0
      %v2228 = vmax.f32 %v2148, 0.0
      %v2229 = vmax.f32 %v2149, 0.0
      %v2230 = vmax.f32 %v2150, 0.0
      %v2231 = vmax.f32 %v2151, 0.0
      %v2232 = vmax.f32 %v2152, 0.0
      %v2233 = vmax.f32 %v2153, 0.0
      %v2234 = vmax.f32 %v2154, 0.0
      %v2235 = vmax.f32 %v2155, 0.0
      %v2236 = vmax.f32 %v2156, 0.0
      %v2237 = vmax.f32 %v2157, 0.0
      %v2238 = vmax.f32 %v2158, 0.0
      %v2239 = vmax.f32 %v2159, 0.0
      %v2240 = vmax.f32 %v2160, 0.0
      %v2241 = vmax.f32 %v2161, 0.0
      %v2242 = vmax.f32 %v2162, 0.0
      %v2243 = vmax.f32 %v2163, 0.0
      %v2244 = vmax.f32 %v2164, 0.0
      %v2245 = vmax.f32 %v2165, 0.0
      %v2246 = vmax.f32 %v2166, 0.0
      %v2247 = vmax.f32 %v2167, 0.0
      %v2248 = vmax.f32 %v2168, 0.0
      %v2249 = vmax.f32 %v2169, 0.0
      %v2250 = vmax.f32 %v2170, 0.0
      %v2251 = vmax.f32 %v2171, 0.0
      %v2252 = vmax.f32 %v2172, 0.0
      %v2253 = vmax.f32 %v2173, 0.0
      %v2254 = vmax.f32 %v2174, 0.0
      %v2255 = vmax.f32 %v2175, 0.0
      %v2256 = vmax.f32 %v2176, 0.0
      %v2257 = vmax.f32 %v2177, 0.0
      %v2258 = vmax.f32 %v2178, 0.0
      %v2259 = vmax.f32 %v2179, 0.0
      %v2260 = vmax.f32 %v2180, 0.0
      %v2261 = vmax.f32 %v2181, 0.0
      %v2262 = vmax.f32 %v2182, 0.0
      %v2263 = vmax.f32 %v2183, 0.0
      %v2264 = vmax.f32 %v2184, 0.0
      %v2265 = vmax.f32 %v2185, 0.0
      %v2266 = vmax.f32 %v2186, 0.0
      %v2267 = vmax.f32 %v2187, 0.0
      %v2268 = vmax.f32 %v2188, 0.0
      %v2269 = vmax.f32 %v2189, 0.0
      %v2270 = vmax.f32 %v2190, 0.0
      %v2271 = vmax.f32 %v2191, 0.0
      %v2272 = vmax.f32 %v2192, 0.0
      %v2273 = vmax.f32 %v2193, 0.0
      %v2274 = vmin.f32 %v2194, 6.0
      %v2275 = vmin.f32 %v2195, 6.0
      %v2276 = vmin.f32 %v2196, 6.0
      %v2277 = vmin.f32 %v2197, 6.0
      %v2278 = vmin.f32 %v2198, 6.0
      %v2279 = vmin.f32 %v2199, 6.0
      %v2280 = vmin.f32 %v2200, 6.0
      %v2281 = vmin.f32 %v2201, 6.0
      %v2282 = vmin.f32 %v2202, 6.0
      %v2283 = vmin.f32 %v2203, 6.0
      %v2284 = vmin.f32 %v2204, 6.0
      %v2285 = vmin.f32 %v2205, 6.0
      %v2286 = vmin.f32 %v2206, 6.0
      %v2287 = vmin.f32 %v2207, 6.0
      %v2288 = vmin.f32 %v2208, 6.0
      %v2289 = vmin.f32 %v2209, 6.0
      %v2290 = vmin.f32 %v2210, 6.0
      %v2291 = vmin.f32 %v2211, 6.0
      %v2292 = vmin.f32 %v2212, 6.0
      %v2293 = vmin.f32 %v2213, 6.0
      %v2294 = vmin.f32 %v2214, 6.0
      %v2295 = vmin.f32 %v2215, 6.0
      %v2296 = vmin.f32 %v2216, 6.0
      %v2297 = vmin.f32 %v2217, 6.0
      %v2298 = vmin.f32 %v2218, 6.0
      %v2299 = vmin.f32 %v2219, 6.0
      %v2300 = vmin.f32 %v2220, 6.0
      %v2301 = vmin.f32 %v2221, 6.0
      %v2302 = vmin.f32 %v2222, 6.0
      %v2303 = vmin.f32 %v2223, 6.0
      %v2304 = vmin.f32 %v2224, 6.0
      %v2305 = vmin.f32 %v2225, 6.0
      %v2306 = vmin.f32 %v2226, 6.0
      %v2307 = vmin.f32 %v2227, 6.0
      %v2308 = vmin.f32 %v2228, 6.0
      %v2309 = vmin.f32 %v2229, 6.0
      %v2310 = vmin.f32 %v2230, 6.0
      %v2311 = vmin.f32 %v2231, 6.0
      %v2312 = vmin.f32 %v2232, 6.0
      %v2313 = vmin.f32 %v2233, 6.0
      %v2314 = vmin.f32 %v2234, 6.0
      %v2315 = vmin.f32 %v2235, 6.0
      %v2316 = vmin.f32 %v2236, 6.0
      %v2317 = vmin.f32 %v2237, 6.0
      %v2318 = vmin.f32 %v2238, 6.0
      %v2319 = vmin.f32 %v2239, 6.0
      %v2320 = vmin.f32 %v2240, 6.0
      %v2321 = vmin.f32 %v2241, 6.0
      %v2322 = vmin.f32 %v2242, 6.0
      %v2323 = vmin.f32 %v2243, 6.0
      %v2324 = vmin.f32 %v2244, 6.0
      %v2325 = vmin.f32 %v2245, 6.0
      %v2326 = vmin.f32 %v2246, 6.0
      %v2327 = vmin.f32 %v2247, 6.0
      %v2328 = vmin.f32 %v2248, 6.0
      %v2329 = vmin.f32 %v2249, 6.0
      %v2330 = vmin.f32 %v2250, 6.0
      %v2331 = vmin.f32 %v2251, 6.0
      %v2332 = vmin.f32 %v2252, 6.0
      %v2333 = vmin.f32 %v2253, 6.0
      %v2334 = vmin.f32 %v2254, 6.0
      %v2335 = vmin.f32 %v2255, 6.0
      %v2336 = vmin.f32 %v2256, 6.0
      %v2337 = vmin.f32 %v2257, 6.0
      %v2338 = vmin.f32 %v2258, 6.0
      %v2339 = vmin.f32 %v2259, 6.0
      %v2340 = vmin.f32 %v2260, 6.0
      %v2341 = vmin.f32 %v2261, 6.0
      %v2342 = vmin.f32 %v2262, 6.0
      %v2343 = vmin.f32 %v2263, 6.0
      %v2344 = vmin.f32 %v2264, 6.0
      %v2345 = vmin.f32 %v2265, 6.0
      %v2346 = vmin.f32 %v2266, 6.0
      %v2347 = vmin.f32 %v2267, 6.0
      %v2348 = vmin.f32 %v2268, 6.0
      %v2349 = vmin.f32 %v2269, 6.0
      %v2350 = vmin.f32 %v2270, 6.0
      %v2351 = vmin.f32 %v2271, 6.0
      %v2352 = vmin.f32 %v2272, 6.0
      %v2353 = vmin.f32 %v2273, 6.0
      %v2354 = vmul.f32 %v1716, %v2274
      %v2355 = vmul.f32 %v1721, %v2275
      %v2356 = vmul.f32 %v1726, %v2276
      %v2357 = vmul.f32 %v1731, %v2277
      %v2358 = vmul.f32 %v1736, %v2278
      %v2359 = vmul.f32 %v1741, %v2279
      %v2360 = vmul.f32 %v1746, %v2280
      %v2361 = vmul.f32 %v1751, %v2281
      %v2362 = vmul.f32 %v1756, %v2282
      %v2363 = vmul.f32 %v1761, %v2283
      %v2364 = vmul.f32 %v1766, %v2284
      %v2365 = vmul.f32 %v1771, %v2285
      %v2366 = vmul.f32 %v1776, %v2286
      %v2367 = vmul.f32 %v1781, %v2287
      %v2368 = vmul.f32 %v1786, %v2288
      %v2369 = vmul.f32 %v1791, %v2289
      %v2370 = vmul.f32 %v1796, %v2290
      %v2371 = vmul.f32 %v1801, %v2291
      %v2372 = vmul.f32 %v1806, %v2292
      %v2373 = vmul.f32 %v1811, %v2293
      %v2374 = vmul.f32 %v1816, %v2294
      %v2375 = vmul.f32 %v1821, %v2295
      %v2376 = vmul.f32 %v1826, %v2296
      %v2377 = vmul.f32 %v1831, %v2297
      %v2378 = vmul.f32 %v1836, %v2298
      %v2379 = vmul.f32 %v1841, %v2299
      %v2380 = vmul.f32 %v1846, %v2300
      %v2381 = vmul.f32 %v1851, %v2301
      %v2382 = vmul.f32 %v1856, %v2302
      %v2383 = vmul.f32 %v1861, %v2303
      %v2384 = vmul.f32 %v1866, %v2304
      %v2385 = vmul.f32 %v1871, %v2305
      %v2386 = vmul.f32 %v1876, %v2306
      %v2387 = vmul.f32 %v1881, %v2307
      %v2388 = vmul.f32 %v1886, %v2308
      %v2389 = vmul.f32 %v1891, %v2309
      %v2390 = vmul.f32 %v1896, %v2310
      %v2391 = vmul.f32 %v1901, %v2311
      %v2392 = vmul.f32 %v1906, %v2312
      %v2393 = vmul.f32 %v1911, %v2313
      %v2394 = vmul.f32 %v1916, %v2314
      %v2395 = vmul.f32 %v1921, %v2315
      %v2396 = vmul.f32 %v1926, %v2316
      %v2397 = vmul.f32 %v1931, %v2317
      %v2398 = vmul.f32 %v1936, %v2318
      %v2399 = vmul.f32 %v1941, %v2319
      %v2400 = vmul.f32 %v1946, %v2320
      %v2401 = vmul.f32 %v1951, %v2321
      %v2402 = vmul.f32 %v1956, %v2322
      %v2403 = vmul.f32 %v1961, %v2323
      %v2404 = vmul.f32 %v1966, %v2324
      %v2405 = vmul.f32 %v1971, %v2325
      %v2406 = vmul.f32 %v1976, %v2326
      %v2407 = vmul.f32 %v1981, %v2327
      %v2408 = vmul.f32 %v1986, %v2328
      %v2409 = vmul.f32 %v1991, %v2329
      %v2410 = vmul.f32 %v1996, %v2330
      %v2411 = vmul.f32 %v2001, %v2331
      %v2412 = vmul.f32 %v2006, %v2332
      %v2413 = vmul.f32 %v2011, %v2333
      %v2414 = vmul.f32 %v2016, %v2334
      %v2415 = vmul.f32 %v2021, %v2335
      %v2416 = vmul.f32 %v2026, %v2336
      %v2417 = vmul.f32 %v2031, %v2337
      %v2418 = vmul.f32 %v2036, %v2338
      %v2419 = vmul.f32 %v2041, %v2339
      %v2420 = vmul.f32 %v2046, %v2340
      %v2421 = vmul.f32 %v2051, %v2341
      %v2422 = vmul.f32 %v2056, %v2342
      %v2423 = vmul.f32 %v2061, %v2343
      %v2424 = vmul.f32 %v2066, %v2344
      %v2425 = vmul.f32 %v2071, %v2345
      %v2426 = vmul.f32 %v2076, %v2346
      %v2427 = vmul.f32 %v2081, %v2347
      %v2428 = vmul.f32 %v2086, %v2348
      %v2429 = vmul.f32 %v2091, %v2349
      %v2430 = vmul.f32 %v2096, %v2350
      %v2431 = vmul.f32 %v2101, %v2351
      %v2432 = vmul.f32 %v2106, %v2352
      %v2433 = vmul.f32 %v2111, %v2353
      %v2434 = vld [vmem:[%s5] sm:$0xff]
      %v2435 = vld [vmem:[%s5 + $0x8] sm:$0xff]
      %v2436 = vld [vmem:[%s5 + $0x10] sm:$0xff]
      %v2437 = vld [vmem:[%s6] sm:$0x1]
      %v2439 = vlaneseq
      %v2440 = vshrl.u32 %v2439, 7
      %v2441 = vsub.s32 0, %v2440
      %v2442 = vrot.slane %v2437, %v2441
      %vm2444 = vcmask 195584
      %v2446 = vsel %vm2444, %v2354, 0
      %v2449 = vsel %vm2444, %v2355, 0
      %v2452 = vsel %vm2444, %v2356, 0
      %v2455 = vsel %vm2444, %v2357, 0
      %v2458 = vsel %vm2444, %v2358, 0
      %v2461 = vsel %vm2444, %v2359, 0
      %v2464 = vsel %vm2444, %v2360, 0
      %v2467 = vsel %vm2444, %v2361, 0
      %v2470 = vsel %vm2444, %v2362, 0
      %v2473 = vsel %vm2444, %v2363, 0
      %v2476 = vsel %vm2444, %v2364, 0
      %v2479 = vsel %vm2444, %v2365, 0
      %v2482 = vsel %vm2444, %v2366, 0
      %v2485 = vsel %vm2444, %v2367, 0
      %v2488 = vsel %vm2444, %v2368, 0
      %v2491 = vsel %vm2444, %v2369, 0
      %v2494 = vsel %vm2444, %v2370, 0
      %v2497 = vsel %vm2444, %v2371, 0
      %v2500 = vsel %vm2444, %v2372, 0
      %v2503 = vsel %vm2444, %v2373, 0
      %v2506 = vsel %vm2444, %v2374, 0
      %v2509 = vsel %vm2444, %v2375, 0
      %v2512 = vsel %vm2444, %v2376, 0
      %v2515 = vsel %vm2444, %v2377, 0
      %v2518 = vsel %vm2444, %v2378, 0
      %v2521 = vsel %vm2444, %v2379, 0
      %v2524 = vsel %vm2444, %v2380, 0
      %v2527 = vsel %vm2444, %v2381, 0
      %v2530 = vsel %vm2444, %v2382, 0
      %v2533 = vsel %vm2444, %v2383, 0
      %v2536 = vsel %vm2444, %v2384, 0
      %v2539 = vsel %vm2444, %v2385, 0
      %v2542 = vsel %vm2444, %v2386, 0
      %v2545 = vsel %vm2444, %v2387, 0
      %v2548 = vsel %vm2444, %v2388, 0
      %v2551 = vsel %vm2444, %v2389, 0
      %v2554 = vsel %vm2444, %v2390, 0
      %v2557 = vsel %vm2444, %v2391, 0
      %v2560 = vsel %vm2444, %v2392, 0
      %v2563 = vsel %vm2444, %v2393, 0
      %v2566 = vsel %vm2444, %v2394, 0
      %v2569 = vsel %vm2444, %v2395, 0
      %v2572 = vsel %vm2444, %v2396, 0
      %v2575 = vsel %vm2444, %v2397, 0
      %v2578 = vsel %vm2444, %v2398, 0
      %v2581 = vsel %vm2444, %v2399, 0
      %v2584 = vsel %vm2444, %v2400, 0
      %v2587 = vsel %vm2444, %v2401, 0
      %v2590 = vsel %vm2444, %v2402, 0
      %v2593 = vsel %vm2444, %v2403, 0
      %v2596 = vsel %vm2444, %v2404, 0
      %v2599 = vsel %vm2444, %v2405, 0
      %v2602 = vsel %vm2444, %v2406, 0
      %v2605 = vsel %vm2444, %v2407, 0
      %v2608 = vsel %vm2444, %v2408, 0
      %v2611 = vsel %vm2444, %v2409, 0
      %v2614 = vsel %vm2444, %v2410, 0
      %v2617 = vsel %vm2444, %v2411, 0
      %v2620 = vsel %vm2444, %v2412, 0
      %v2623 = vsel %vm2444, %v2413, 0
      %v2626 = vsel %vm2444, %v2414, 0
      %v2629 = vsel %vm2444, %v2415, 0
      %v2632 = vsel %vm2444, %v2416, 0
      %v2635 = vsel %vm2444, %v2417, 0
      %v2638 = vsel %vm2444, %v2418, 0
      %v2641 = vsel %vm2444, %v2419, 0
      %v2644 = vsel %vm2444, %v2420, 0
      %v2647 = vsel %vm2444, %v2421, 0
      %v2650 = vsel %vm2444, %v2422, 0
      %v2653 = vsel %vm2444, %v2423, 0
      %v2656 = vsel %vm2444, %v2424, 0
      %v2659 = vsel %vm2444, %v2425, 0
      %v2662 = vsel %vm2444, %v2426, 0
      %v2665 = vsel %vm2444, %v2427, 0
      %v2668 = vsel %vm2444, %v2428, 0
      %v2671 = vsel %vm2444, %v2429, 0
      %v2674 = vsel %vm2444, %v2430, 0
      %v2677 = vsel %vm2444, %v2431, 0
      %v2680 = vsel %vm2444, %v2432, 0
      %v2683 = vsel %vm2444, %v2433, 0
      %2685 = vmatprep.subr.mxu0 0.0
      %2686 = vmatpush1.msra.mxu0 %v2434
      %2687 = vmatprep.subr.mxu0 0.0
      %2688 = vmatpush1.msra.mxu0 %v2435
      %2689 = vmatprep.subr.mxu0 0.0
      %2690 = vmatpush1.msra.mxu0 %v2436
      %2691 = vmatprep.subr.mxu0 0.0
      %2692 = vmatpush1.msra.mxu0 0.0
      %2693 = vmatprep.subr.mxu0 0.0
      %2694 = vmatpush1.msra.mxu0 0.0
      %2695 = vmatprep.subr.mxu0 0.0
      %2696 = vmatpush1.msra.mxu0 0.0
      %2697 = vmatprep.subr.mxu0 0.0
      %2698 = vmatpush1.msra.mxu0 0.0
      %2699 = vmatprep.subr.mxu0 0.0
      %2700 = vmatpush1.msra.mxu0 0.0
      %2701 = vmatprep.subr.mxu0 0.0
      %2702 = vmatpush1.msra.mxu0 0.0
      %2703 = vmatprep.subr.mxu0 0.0
      %2704 = vmatpush1.msra.mxu0 0.0
      %2705 = vmatprep.subr.mxu0 0.0
      %2706 = vmatpush1.msra.mxu0 0.0
      %2707 = vmatprep.subr.mxu0 0.0
      %2708 = vmatpush1.msra.mxu0 0.0
      %2709 = vmatprep.subr.mxu0 0.0
      %2710 = vmatpush1.msra.mxu0 0.0
      %2711 = vmatprep.subr.mxu0 0.0
      %2712 = vmatpush1.msra.mxu0 0.0
      %2713 = vmatprep.subr.mxu0 0.0
      %2714 = vmatpush1.msra.mxu0 0.0
      %2715 = vmatprep.subr.mxu0 0.0
      %2716 = vmatpush1.msra.mxu0 0.0
      %2717 = vmatprep.subr.mxu0 0.0
      %2718 = vmatpush1.msra.mxu0 0.0
      %2719 = vmatprep.subr.mxu0 0.0
      %2720 = vmatpush1.msra.mxu0 0.0
      %2721 = vmatprep.subr.mxu0 0.0
      %2722 = vmatpush1.msra.mxu0 0.0
      %2723 = vmatprep.subr.mxu0 0.0
      %2724 = vmatpush1.msra.mxu0 0.0
      %2725 = vmatprep.subr.mxu0 0.0
      %2726 = vmatpush1.msra.mxu0 0.0
      %2727 = vmatprep.subr.mxu0 0.0
      %2728 = vmatpush1.msra.mxu0 0.0
      %2729 = vmatprep.subr.mxu0 0.0
      %2730 = vmatpush1.msra.mxu0 0.0
      %2731 = vmatprep.subr.mxu0 0.0
      %2732 = vmatpush1.msra.mxu0 0.0
      %2733 = vmatprep.subr.mxu0 0.0
      %2734 = vmatpush1.msra.mxu0 0.0
      %2735 = vmatprep.subr.mxu0 0.0
      %2736 = vmatpush1.msra.mxu0 0.0
      %2737 = vmatprep.subr.mxu0 0.0
      %2738 = vmatpush1.msra.mxu0 0.0
      %2739 = vmatprep.subr.mxu0 0.0
      %2740 = vmatpush1.msra.mxu0 0.0
      %2741 = vmatprep.subr.mxu0 0.0
      %2742 = vmatpush1.msra.mxu0 0.0
      %2743 = vmatprep.subr.mxu0 0.0
      %2744 = vmatpush1.msra.mxu0 0.0
      %2745 = vmatprep.subr.mxu0 0.0
      %2746 = vmatpush1.msra.mxu0 0.0
      %2747 = vmatprep.subr.mxu0 0.0
      %2748 = vmatpush1.msra.mxu0 0.0
      %2749 = vmatprep.mubr.f32.mxu0 0.0
      %2750 = vmatmul.mubr.f32.gmra.mrb[0].mxu0 %v2446
      %v2751 = vpop.f32.mrb[0].mxu0
      %v2752 = vadd.f32 %v2442, %v2751
      %v2753 = vpop.f32.mrb[0].mxu0
      %2754 = vmatprep.mubr.f32.mxu0 0.0
      %2755 = vmatmul.mubr.f32.gmra.mrb[0].mxu0 %v2449
      %v2756 = vpop.f32.mrb[0].mxu0
      %v2757 = vadd.f32 %v2442, %v2756
      %v2758 = vpop.f32.mrb[0].mxu0
      %2759 = vmatprep.mubr.f32.mxu0 0.0
      %2760 = vmatmul.mubr.f32.gmra.mrb[0].mxu0 %v2452
      %v2761 = vpop.f32.mrb[0].mxu0
      %v2762 = vadd.f32 %v2442, %v2761
      %v2763 = vpop.f32.mrb[0].mxu0
      %2764 = vmatprep.mubr.f32.mxu0 0.0
      %2765 = vmatmul.mubr.f32.gmra.mrb[0].mxu0 %v2455
      %v2766 = vpop.f32.mrb[0].mxu0
      %v2767 = vadd.f32 %v2442, %v2766
      %v2768 = vpop.f32.mrb[0].mxu0
      %2769 = vmatprep.mubr.f32.mxu0 0.0
      %2770 = vmatmul.mubr.f32.gmra.mrb[0].mxu0 %v2458
      %v2771 = vpop.f32.mrb[0].mxu0
      %v2772 = vadd.f32 %v2442, %v2771
      %v2773 = vpop.f32.mrb[0].mxu0
      %2774 = vmatprep.mubr.f32.mxu0 0.0
      %2775 = vmatmul.mubr.f32.gmra.mrb[0].mxu0 %v2461
      %v2776 = vpop.f32.mrb[0].mxu0
      %v2777 = vadd.f32 %v2442, %v2776
      %v2778 = vpop.f32.mrb[0].mxu0
      %2779 = vmatprep.mubr.f32.mxu0 0.0
      %2780 = vmatmul.mubr.f32.gmra.mrb[0].mxu0 %v2464
      %v2781 = vpop.f32.mrb[0].mxu0
      %v2782 = vadd.f32 %v2442, %v2781
      %v2783 = vpop.f32.mrb[0].mxu0
      %2784 = vmatprep.mubr.f32.mxu0 0.0
      %2785 = vmatmul.mubr.f32.gmra.mrb[0].mxu0 %v2467
      %v2786 = vpop.f32.mrb[0].mxu0
      %v2787 = vadd.f32 %v2442, %v2786
      %v2788 = vpop.f32.mrb[0].mxu0
      %2789 = vmatprep.mubr.f32.mxu0 0.0
      %2790 = vmatmul.mubr.f32.gmra.mrb[0].mxu0 %v2470
      %v2791 = vpop.f32.mrb[0].mxu0
      %v2792 = vadd.f32 %v2442, %v2791
      %v2793 = vpop.f32.mrb[0].mxu0
      %2794 = vmatprep.mubr.f32.mxu0 0.0
      %2795 = vmatmul.mubr.f32.gmra.mrb[0].mxu0 %v2473
      %v2796 = vpop.f32.mrb[0].mxu0
      %v2797 = vadd.f32 %v2442, %v2796
      %v2798 = vpop.f32.mrb[0].mxu0
      %2799 = vmatprep.mubr.f32.mxu0 0.0
      %2800 = vmatmul.mubr.f32.gmra.mrb[0].mxu0 %v2476
      %v2801 = vpop.f32.mrb[0].mxu0
      %v2802 = vadd.f32 %v2442, %v2801
      %v2803 = vpop.f32.mrb[0].mxu0
      %2804 = vmatprep.mubr.f32.mxu0 0.0
      %2805 = vmatmul.mubr.f32.gmra.mrb[0].mxu0 %v2479
      %v2806 = vpop.f32.mrb[0].mxu0
      %v2807 = vadd.f32 %v2442, %v2806
      %v2808 = vpop.f32.mrb[0].mxu0
      %2809 = vmatprep.mubr.f32.mxu0 0.0
      %2810 = vmatmul.mubr.f32.gmra.mrb[0].mxu0 %v2482
      %v2811 = vpop.f32.mrb[0].mxu0
      %v2812 = vadd.f32 %v2442, %v2811
      %v2813 = vpop.f32.mrb[0].mxu0
      %2814 = vmatprep.mubr.f32.mxu0 0.0
      %2815 = vmatmul.mubr.f32.gmra.mrb[0].mxu0 %v2485
      %v2816 = vpop.f32.mrb[0].mxu0
      %v2817 = vadd.f32 %v2442, %v2816
      %v2818 = vpop.f32.mrb[0].mxu0
      %2819 = vmatprep.mubr.f32.mxu0 0.0
      %2820 = vmatmul.mubr.f32.gmra.mrb[0].mxu0 %v2488
      %v2821 = vpop.f32.mrb[0].mxu0
      %v2822 = vadd.f32 %v2442, %v2821
      %v2823 = vpop.f32.mrb[0].mxu0
      %2824 = vmatprep.mubr.f32.mxu0 0.0
      %2825 = vmatmul.mubr.f32.gmra.mrb[0].mxu0 %v2491
      %v2826 = vpop.f32.mrb[0].mxu0
      %v2827 = vadd.f32 %v2442, %v2826
      %v2828 = vpop.f32.mrb[0].mxu0
      %2829 = vmatprep.mubr.f32.mxu0 0.0
      %2830 = vmatmul.mubr.f32.gmra.mrb[0].mxu0 %v2494
      %v2831 = vpop.f32.mrb[0].mxu0
      %v2832 = vadd.f32 %v2442, %v2831
      %v2833 = vpop.f32.mrb[0].mxu0
      %2834 = vmatprep.mubr.f32.mxu0 0.0
      %2835 = vmatmul.mubr.f32.gmra.mrb[0].mxu0 %v2497
      %v2836 = vpop.f32.mrb[0].mxu0
      %v2837 = vadd.f32 %v2442, %v2836
      %v2838 = vpop.f32.mrb[0].mxu0
      %2839 = vmatprep.mubr.f32.mxu0 0.0
      %2840 = vmatmul.mubr.f32.gmra.mrb[0].mxu0 %v2500
      %v2841 = vpop.f32.mrb[0].mxu0
      %v2842 = vadd.f32 %v2442, %v2841
      %v2843 = vpop.f32.mrb[0].mxu0
      %2844 = vmatprep.mubr.f32.mxu0 0.0
      %2845 = vmatmul.mubr.f32.gmra.mrb[0].mxu0 %v2503
      %v2846 = vpop.f32.mrb[0].mxu0
      %v2847 = vadd.f32 %v2442, %v2846
      %v2848 = vpop.f32.mrb[0].mxu0
      %2849 = vmatprep.mubr.f32.mxu0 0.0
      %2850 = vmatmul.mubr.f32.gmra.mrb[0].mxu0 %v2506
      %v2851 = vpop.f32.mrb[0].mxu0
      %v2852 = vadd.f32 %v2442, %v2851
      %v2853 = vpop.f32.mrb[0].mxu0
      %2854 = vmatprep.mubr.f32.mxu0 0.0
      %2855 = vmatmul.mubr.f32.gmra.mrb[0].mxu0 %v2509
      %v2856 = vpop.f32.mrb[0].mxu0
      %v2857 = vadd.f32 %v2442, %v2856
      %v2858 = vpop.f32.mrb[0].mxu0
      %2859 = vmatprep.mubr.f32.mxu0 0.0
      %2860 = vmatmul.mubr.f32.gmra.mrb[0].mxu0 %v2512
      %v2861 = vpop.f32.mrb[0].mxu0
      %v2862 = vadd.f32 %v2442, %v2861
      %v2863 = vpop.f32.mrb[0].mxu0
      %2864 = vmatprep.mubr.f32.mxu0 0.0
      %2865 = vmatmul.mubr.f32.gmra.mrb[0].mxu0 %v2515
      %v2866 = vpop.f32.mrb[0].mxu0
      %v2867 = vadd.f32 %v2442, %v2866
      %v2868 = vpop.f32.mrb[0].mxu0
      %2869 = vmatprep.mubr.f32.mxu0 0.0
      %2870 = vmatmul.mubr.f32.gmra.mrb[0].mxu0 %v2518
      %v2871 = vpop.f32.mrb[0].mxu0
      %v2872 = vadd.f32 %v2442, %v2871
      %v2873 = vpop.f32.mrb[0].mxu0
      %2874 = vmatprep.mubr.f32.mxu0 0.0
      %2875 = vmatmul.mubr.f32.gmra.mrb[0].mxu0 %v2521
      %v2876 = vpop.f32.mrb[0].mxu0
      %v2877 = vadd.f32 %v2442, %v2876
      %v2878 = vpop.f32.mrb[0].mxu0
      %2879 = vmatprep.mubr.f32.mxu0 0.0
      %2880 = vmatmul.mubr.f32.gmra.mrb[0].mxu0 %v2524
      %v2881 = vpop.f32.mrb[0].mxu0
      %v2882 = vadd.f32 %v2442, %v2881
      %v2883 = vpop.f32.mrb[0].mxu0
      %2884 = vmatprep.mubr.f32.mxu0 0.0
      %2885 = vmatmul.mubr.f32.gmra.mrb[0].mxu0 %v2527
      %v2886 = vpop.f32.mrb[0].mxu0
      %v2887 = vadd.f32 %v2442, %v2886
      %v2888 = vpop.f32.mrb[0].mxu0
      %2889 = vmatprep.mubr.f32.mxu0 0.0
      %2890 = vmatmul.mubr.f32.gmra.mrb[0].mxu0 %v2530
      %v2891 = vpop.f32.mrb[0].mxu0
      %v2892 = vadd.f32 %v2442, %v2891
      %v2893 = vpop.f32.mrb[0].mxu0
      %2894 = vmatprep.mubr.f32.mxu0 0.0
      %2895 = vmatmul.mubr.f32.gmra.mrb[0].mxu0 %v2533
      %v2896 = vpop.f32.mrb[0].mxu0
      %v2897 = vadd.f32 %v2442, %v2896
      %v2898 = vpop.f32.mrb[0].mxu0
      %2899 = vmatprep.mubr.f32.mxu0 0.0
      %2900 = vmatmul.mubr.f32.gmra.mrb[0].mxu0 %v2536
      %v2901 = vpop.f32.mrb[0].mxu0
      %v2902 = vadd.f32 %v2442, %v2901
      %v2903 = vpop.f32.mrb[0].mxu0
      %2904 = vmatprep.mubr.f32.mxu0 0.0
      %2905 = vmatmul.mubr.f32.gmra.mrb[0].mxu0 %v2539
      %v2906 = vpop.f32.mrb[0].mxu0
      %v2907 = vadd.f32 %v2442, %v2906
      %v2908 = vpop.f32.mrb[0].mxu0
      %2909 = vmatprep.mubr.f32.mxu0 0.0
      %2910 = vmatmul.mubr.f32.gmra.mrb[0].mxu0 %v2542
      %v2911 = vpop.f32.mrb[0].mxu0
      %v2912 = vadd.f32 %v2442, %v2911
      %v2913 = vpop.f32.mrb[0].mxu0
      %2914 = vmatprep.mubr.f32.mxu0 0.0
      %2915 = vmatmul.mubr.f32.gmra.mrb[0].mxu0 %v2545
      %v2916 = vpop.f32.mrb[0].mxu0
      %v2917 = vadd.f32 %v2442, %v2916
      %v2918 = vpop.f32.mrb[0].mxu0
      %2919 = vmatprep.mubr.f32.mxu0 0.0
      %2920 = vmatmul.mubr.f32.gmra.mrb[0].mxu0 %v2548
      %v2921 = vpop.f32.mrb[0].mxu0
      %v2922 = vadd.f32 %v2442, %v2921
      %v2923 = vpop.f32.mrb[0].mxu0
      %2924 = vmatprep.mubr.f32.mxu0 0.0
      %2925 = vmatmul.mubr.f32.gmra.mrb[0].mxu0 %v2551
      %v2926 = vpop.f32.mrb[0].mxu0
      %v2927 = vadd.f32 %v2442, %v2926
      %v2928 = vpop.f32.mrb[0].mxu0
      %2929 = vmatprep.mubr.f32.mxu0 0.0
      %2930 = vmatmul.mubr.f32.gmra.mrb[0].mxu0 %v2554
      %v2931 = vpop.f32.mrb[0].mxu0
      %v2932 = vadd.f32 %v2442, %v2931
      %v2933 = vpop.f32.mrb[0].mxu0
      %2934 = vmatprep.mubr.f32.mxu0 0.0
      %2935 = vmatmul.mubr.f32.gmra.mrb[0].mxu0 %v2557
      %v2936 = vpop.f32.mrb[0].mxu0
      %v2937 = vadd.f32 %v2442, %v2936
      %v2938 = vpop.f32.mrb[0].mxu0
      %2939 = vmatprep.mubr.f32.mxu0 0.0
      %2940 = vmatmul.mubr.f32.gmra.mrb[0].mxu0 %v2560
      %v2941 = vpop.f32.mrb[0].mxu0
      %v2942 = vadd.f32 %v2442, %v2941
      %v2943 = vpop.f32.mrb[0].mxu0
      %2944 = vmatprep.mubr.f32.mxu0 0.0
      %2945 = vmatmul.mubr.f32.gmra.mrb[0].mxu0 %v2563
      %v2946 = vpop.f32.mrb[0].mxu0
      %v2947 = vadd.f32 %v2442, %v2946
      %v2948 = vpop.f32.mrb[0].mxu0
      %2949 = vmatprep.mubr.f32.mxu0 0.0
      %2950 = vmatmul.mubr.f32.gmra.mrb[0].mxu0 %v2566
      %v2951 = vpop.f32.mrb[0].mxu0
      %v2952 = vadd.f32 %v2442, %v2951
      %v2953 = vpop.f32.mrb[0].mxu0
      %2954 = vmatprep.mubr.f32.mxu0 0.0
      %2955 = vmatmul.mubr.f32.gmra.mrb[0].mxu0 %v2569
      %v2956 = vpop.f32.mrb[0].mxu0
      %v2957 = vadd.f32 %v2442, %v2956
      %v2958 = vpop.f32.mrb[0].mxu0
      %2959 = vmatprep.mubr.f32.mxu0 0.0
      %2960 = vmatmul.mubr.f32.gmra.mrb[0].mxu0 %v2572
      %v2961 = vpop.f32.mrb[0].mxu0
      %v2962 = vadd.f32 %v2442, %v2961
      %v2963 = vpop.f32.mrb[0].mxu0
      %2964 = vmatprep.mubr.f32.mxu0 0.0
      %2965 = vmatmul.mubr.f32.gmra.mrb[0].mxu0 %v2575
      %v2966 = vpop.f32.mrb[0].mxu0
      %v2967 = vadd.f32 %v2442, %v2966
      %v2968 = vpop.f32.mrb[0].mxu0
      %2969 = vmatprep.mubr.f32.mxu0 0.0
      %2970 = vmatmul.mubr.f32.gmra.mrb[0].mxu0 %v2578
      %v2971 = vpop.f32.mrb[0].mxu0
      %v2972 = vadd.f32 %v2442, %v2971
      %v2973 = vpop.f32.mrb[0].mxu0
      %2974 = vmatprep.mubr.f32.mxu0 0.0
      %2975 = vmatmul.mubr.f32.gmra.mrb[0].mxu0 %v2581
      %v2976 = vpop.f32.mrb[0].mxu0
      %v2977 = vadd.f32 %v2442, %v2976
      %v2978 = vpop.f32.mrb[0].mxu0
      %2979 = vmatprep.mubr.f32.mxu0 0.0
      %2980 = vmatmul.mubr.f32.gmra.mrb[0].mxu0 %v2584
      %v2981 = vpop.f32.mrb[0].mxu0
      %v2982 = vadd.f32 %v2442, %v2981
      %v2983 = vpop.f32.mrb[0].mxu0
      %2984 = vmatprep.mubr.f32.mxu0 0.0
      %2985 = vmatmul.mubr.f32.gmra.mrb[0].mxu0 %v2587
      %v2986 = vpop.f32.mrb[0].mxu0
      %v2987 = vadd.f32 %v2442, %v2986
      %v2988 = vpop.f32.mrb[0].mxu0
      %2989 = vmatprep.mubr.f32.mxu0 0.0
      %2990 = vmatmul.mubr.f32.gmra.mrb[0].mxu0 %v2590
      %v2991 = vpop.f32.mrb[0].mxu0
      %v2992 = vadd.f32 %v2442, %v2991
      %v2993 = vpop.f32.mrb[0].mxu0
      %2994 = vmatprep.mubr.f32.mxu0 0.0
      %2995 = vmatmul.mubr.f32.gmra.mrb[0].mxu0 %v2593
      %v2996 = vpop.f32.mrb[0].mxu0
      %v2997 = vadd.f32 %v2442, %v2996
      %v2998 = vpop.f32.mrb[0].mxu0
      %2999 = vmatprep.mubr.f32.mxu0 0.0
      %3000 = vmatmul.mubr.f32.gmra.mrb[0].mxu0 %v2596
      %v3001 = vpop.f32.mrb[0].mxu0
      %v3002 = vadd.f32 %v2442, %v3001
      %v3003 = vpop.f32.mrb[0].mxu0
      %3004 = vmatprep.mubr.f32.mxu0 0.0
      %3005 = vmatmul.mubr.f32.gmra.mrb[0].mxu0 %v2599
      %v3006 = vpop.f32.mrb[0].mxu0
      %v3007 = vadd.f32 %v2442, %v3006
      %v3008 = vpop.f32.mrb[0].mxu0
      %3009 = vmatprep.mubr.f32.mxu0 0.0
      %3010 = vmatmul.mubr.f32.gmra.mrb[0].mxu0 %v2602
      %v3011 = vpop.f32.mrb[0].mxu0
      %v3012 = vadd.f32 %v2442, %v3011
      %v3013 = vpop.f32.mrb[0].mxu0
      %3014 = vmatprep.mubr.f32.mxu0 0.0
      %3015 = vmatmul.mubr.f32.gmra.mrb[0].mxu0 %v2605
      %v3016 = vpop.f32.mrb[0].mxu0
      %v3017 = vadd.f32 %v2442, %v3016
      %v3018 = vpop.f32.mrb[0].mxu0
      %3019 = vmatprep.mubr.f32.mxu0 0.0
      %3020 = vmatmul.mubr.f32.gmra.mrb[0].mxu0 %v2608
      %v3021 = vpop.f32.mrb[0].mxu0
      %v3022 = vadd.f32 %v2442, %v3021
      %v3023 = vpop.f32.mrb[0].mxu0
      %3024 = vmatprep.mubr.f32.mxu0 0.0
      %3025 = vmatmul.mubr.f32.gmra.mrb[0].mxu0 %v2611
      %v3026 = vpop.f32.mrb[0].mxu0
      %v3027 = vadd.f32 %v2442, %v3026
      %v3028 = vpop.f32.mrb[0].mxu0
      %3029 = vmatprep.mubr.f32.mxu0 0.0
      %3030 = vmatmul.mubr.f32.gmra.mrb[0].mxu0 %v2614
      %v3031 = vpop.f32.mrb[0].mxu0
      %v3032 = vadd.f32 %v2442, %v3031
      %v3033 = vpop.f32.mrb[0].mxu0
      %3034 = vmatprep.mubr.f32.mxu0 0.0
      %3035 = vmatmul.mubr.f32.gmra.mrb[0].mxu0 %v2617
      %v3036 = vpop.f32.mrb[0].mxu0
      %v3037 = vadd.f32 %v2442, %v3036
      %v3038 = vpop.f32.mrb[0].mxu0
      %3039 = vmatprep.mubr.f32.mxu0 0.0
      %3040 = vmatmul.mubr.f32.gmra.mrb[0].mxu0 %v2620
      %v3041 = vpop.f32.mrb[0].mxu0
      %v3042 = vadd.f32 %v2442, %v3041
      %v3043 = vpop.f32.mrb[0].mxu0
      %3044 = vmatprep.mubr.f32.mxu0 0.0
      %3045 = vmatmul.mubr.f32.gmra.mrb[0].mxu0 %v2623
      %v3046 = vpop.f32.mrb[0].mxu0
      %v3047 = vadd.f32 %v2442, %v3046
      %v3048 = vpop.f32.mrb[0].mxu0
      %3049 = vmatprep.mubr.f32.mxu0 0.0
      %3050 = vmatmul.mubr.f32.gmra.mrb[0].mxu0 %v2626
      %v3051 = vpop.f32.mrb[0].mxu0
      %v3052 = vadd.f32 %v2442, %v3051
      %v3053 = vpop.f32.mrb[0].mxu0
      %3054 = vmatprep.mubr.f32.mxu0 0.0
      %3055 = vmatmul.mubr.f32.gmra.mrb[0].mxu0 %v2629
      %v3056 = vpop.f32.mrb[0].mxu0
      %v3057 = vadd.f32 %v2442, %v3056
      %v3058 = vpop.f32.mrb[0].mxu0
      %3059 = vmatprep.mubr.f32.mxu0 0.0
      %3060 = vmatmul.mubr.f32.gmra.mrb[0].mxu0 %v2632
      %v3061 = vpop.f32.mrb[0].mxu0
      %v3062 = vadd.f32 %v2442, %v3061
      %v3063 = vpop.f32.mrb[0].mxu0
      %3064 = vmatprep.mubr.f32.mxu0 0.0
      %3065 = vmatmul.mubr.f32.gmra.mrb[0].mxu0 %v2635
      %v3066 = vpop.f32.mrb[0].mxu0
      %v3067 = vadd.f32 %v2442, %v3066
      %v3068 = vpop.f32.mrb[0].mxu0
      %3069 = vmatprep.mubr.f32.mxu0 0.0
      %3070 = vmatmul.mubr.f32.gmra.mrb[0].mxu0 %v2638
      %v3071 = vpop.f32.mrb[0].mxu0
      %v3072 = vadd.f32 %v2442, %v3071
      %v3073 = vpop.f32.mrb[0].mxu0
      %3074 = vmatprep.mubr.f32.mxu0 0.0
      %3075 = vmatmul.mubr.f32.gmra.mrb[0].mxu0 %v2641
      %v3076 = vpop.f32.mrb[0].mxu0
      %v3077 = vadd.f32 %v2442, %v3076
      %v3078 = vpop.f32.mrb[0].mxu0
      %3079 = vmatprep.mubr.f32.mxu0 0.0
      %3080 = vmatmul.mubr.f32.gmra.mrb[0].mxu0 %v2644
      %v3081 = vpop.f32.mrb[0].mxu0
      %v3082 = vadd.f32 %v2442, %v3081
      %v3083 = vpop.f32.mrb[0].mxu0
      %3084 = vmatprep.mubr.f32.mxu0 0.0
      %3085 = vmatmul.mubr.f32.gmra.mrb[0].mxu0 %v2647
      %v3086 = vpop.f32.mrb[0].mxu0
      %v3087 = vadd.f32 %v2442, %v3086
      %v3088 = vpop.f32.mrb[0].mxu0
      %3089 = vmatprep.mubr.f32.mxu0 0.0
      %3090 = vmatmul.mubr.f32.gmra.mrb[0].mxu0 %v2650
      %v3091 = vpop.f32.mrb[0].mxu0
      %v3092 = vadd.f32 %v2442, %v3091
      %v3093 = vpop.f32.mrb[0].mxu0
      %3094 = vmatprep.mubr.f32.mxu0 0.0
      %3095 = vmatmul.mubr.f32.gmra.mrb[0].mxu0 %v2653
      %v3096 = vpop.f32.mrb[0].mxu0
      %v3097 = vadd.f32 %v2442, %v3096
      %v3098 = vpop.f32.mrb[0].mxu0
      %3099 = vmatprep.mubr.f32.mxu0 0.0
      %3100 = vmatmul.mubr.f32.gmra.mrb[0].mxu0 %v2656
      %v3101 = vpop.f32.mrb[0].mxu0
      %v3102 = vadd.f32 %v2442, %v3101
      %v3103 = vpop.f32.mrb[0].mxu0
      %3104 = vmatprep.mubr.f32.mxu0 0.0
      %3105 = vmatmul.mubr.f32.gmra.mrb[0].mxu0 %v2659
      %v3106 = vpop.f32.mrb[0].mxu0
      %v3107 = vadd.f32 %v2442, %v3106
      %v3108 = vpop.f32.mrb[0].mxu0
      %3109 = vmatprep.mubr.f32.mxu0 0.0
      %3110 = vmatmul.mubr.f32.gmra.mrb[0].mxu0 %v2662
      %v3111 = vpop.f32.mrb[0].mxu0
      %v3112 = vadd.f32 %v2442, %v3111
      %v3113 = vpop.f32.mrb[0].mxu0
      %3114 = vmatprep.mubr.f32.mxu0 0.0
      %3115 = vmatmul.mubr.f32.gmra.mrb[0].mxu0 %v2665
      %v3116 = vpop.f32.mrb[0].mxu0
      %v3117 = vadd.f32 %v2442, %v3116
      %v3118 = vpop.f32.mrb[0].mxu0
      %3119 = vmatprep.mubr.f32.mxu0 0.0
      %3120 = vmatmul.mubr.f32.gmra.mrb[0].mxu0 %v2668
      %v3121 = vpop.f32.mrb[0].mxu0
      %v3122 = vadd.f32 %v2442, %v3121
      %v3123 = vpop.f32.mrb[0].mxu0
      %3124 = vmatprep.mubr.f32.mxu0 0.0
      %3125 = vmatmul.mubr.f32.gmra.mrb[0].mxu0 %v2671
      %v3126 = vpop.f32.mrb[0].mxu0
      %v3127 = vadd.f32 %v2442, %v3126
      %v3128 = vpop.f32.mrb[0].mxu0
      %3129 = vmatprep.mubr.f32.mxu0 0.0
      %3130 = vmatmul.mubr.f32.gmra.mrb[0].mxu0 %v2674
      %v3131 = vpop.f32.mrb[0].mxu0
      %v3132 = vadd.f32 %v2442, %v3131
      %v3133 = vpop.f32.mrb[0].mxu0
      %3134 = vmatprep.mubr.f32.mxu0 0.0
      %3135 = vmatmul.mubr.f32.gmra.mrb[0].mxu0 %v2677
      %v3136 = vpop.f32.mrb[0].mxu0
      %v3137 = vadd.f32 %v2442, %v3136
      %v3138 = vpop.f32.mrb[0].mxu0
      %3139 = vmatprep.mubr.f32.mxu0 0.0
      %3140 = vmatmul.mubr.f32.gmra.mrb[0].mxu0 %v2680
      %v3141 = vpop.f32.mrb[0].mxu0
      %v3142 = vadd.f32 %v2442, %v3141
      %v3143 = vpop.f32.mrb[0].mxu0
      %3144 = vmatprep.mubr.f32.mxu0 0.0
      %3145 = vmatmul.mubr.f32.gmra.mrb[0].mxu0 %v2683
      %v3146 = vpop.f32.mrb[0].mxu0
      %v3147 = vadd.f32 %v2442, %v3146
      %v3148 = vpop.f32.mrb[0].mxu0
      %3149 = vdwg.mxu0
      %v3150 = vadd.f32 %v2752, %v282
      %v3151 = vadd.f32 %v2757, %v283
      %v3152 = vadd.f32 %v2762, %v284
      %v3153 = vadd.f32 %v2767, %v285
      %v3154 = vadd.f32 %v2772, %v286
      %v3155 = vadd.f32 %v2777, %v287
      %v3156 = vadd.f32 %v2782, %v288
      %v3157 = vadd.f32 %v2787, %v289
      %v3158 = vadd.f32 %v2792, %v290
      %v3159 = vadd.f32 %v2797, %v291
      %v3160 = vadd.f32 %v2802, %v292
      %v3161 = vadd.f32 %v2807, %v293
      %v3162 = vadd.f32 %v2812, %v294
      %v3163 = vadd.f32 %v2817, %v295
      %v3164 = vadd.f32 %v2822, %v296
      %v3165 = vadd.f32 %v2827, %v297
      %v3166 = vadd.f32 %v2832, %v298
      %v3167 = vadd.f32 %v2837, %v299
      %v3168 = vadd.f32 %v2842, %v300
      %v3169 = vadd.f32 %v2847, %v301
      %v3170 = vadd.f32 %v2852, %v302
      %v3171 = vadd.f32 %v2857, %v303
      %v3172 = vadd.f32 %v2862, %v304
      %v3173 = vadd.f32 %v2867, %v305
      %v3174 = vadd.f32 %v2872, %v306
      %v3175 = vadd.f32 %v2877, %v307
      %v3176 = vadd.f32 %v2882, %v308
      %v3177 = vadd.f32 %v2887, %v309
      %v3178 = vadd.f32 %v2892, %v310
      %v3179 = vadd.f32 %v2897, %v311
      %v3180 = vadd.f32 %v2902, %v312
      %v3181 = vadd.f32 %v2907, %v313
      %v3182 = vadd.f32 %v2912, %v314
      %v3183 = vadd.f32 %v2917, %v315
      %v3184 = vadd.f32 %v2922, %v316
      %v3185 = vadd.f32 %v2927, %v317
      %v3186 = vadd.f32 %v2932, %v318
      %v3187 = vadd.f32 %v2937, %v319
      %v3188 = vadd.f32 %v2942, %v320
      %v3189 = vadd.f32 %v2947, %v321
      %v3190 = vadd.f32 %v2952, %v322
      %v3191 = vadd.f32 %v2957, %v323
      %v3192 = vadd.f32 %v2962, %v324
      %v3193 = vadd.f32 %v2967, %v325
      %v3194 = vadd.f32 %v2972, %v326
      %v3195 = vadd.f32 %v2977, %v327
      %v3196 = vadd.f32 %v2982, %v328
      %v3197 = vadd.f32 %v2987, %v329
      %v3198 = vadd.f32 %v2992, %v330
      %v3199 = vadd.f32 %v2997, %v331
      %v3200 = vadd.f32 %v3002, %v332
      %v3201 = vadd.f32 %v3007, %v333
      %v3202 = vadd.f32 %v3012, %v334
      %v3203 = vadd.f32 %v3017, %v335
      %v3204 = vadd.f32 %v3022, %v336
      %v3205 = vadd.f32 %v3027, %v337
      %v3206 = vadd.f32 %v3032, %v338
      %v3207 = vadd.f32 %v3037, %v339
      %v3208 = vadd.f32 %v3042, %v340
      %v3209 = vadd.f32 %v3047, %v341
      %v3210 = vadd.f32 %v3052, %v342
      %v3211 = vadd.f32 %v3057, %v343
      %v3212 = vadd.f32 %v3062, %v344
      %v3213 = vadd.f32 %v3067, %v345
      %v3214 = vadd.f32 %v3072, %v346
      %v3215 = vadd.f32 %v3077, %v347
      %v3216 = vadd.f32 %v3082, %v348
      %v3217 = vadd.f32 %v3087, %v349
      %v3218 = vadd.f32 %v3092, %v350
      %v3219 = vadd.f32 %v3097, %v351
      %v3220 = vadd.f32 %v3102, %v352
      %v3221 = vadd.f32 %v3107, %v353
      %v3222 = vadd.f32 %v3112, %v354
      %v3223 = vadd.f32 %v3117, %v355
      %v3224 = vadd.f32 %v3122, %v356
      %v3225 = vadd.f32 %v3127, %v357
      %v3226 = vadd.f32 %v3132, %v358
      %v3227 = vadd.f32 %v3137, %v359
      %v3228 = vadd.f32 %v3142, %v360
      %v3229 = vadd.f32 %v3147, %v361
      %3230 = vst.msk [vmem:[%s280] sm:$0xff] %vm371, %v3150
      %3231 = vst.msk [vmem:[%s280 + $0x8] sm:$0xff] %vm371, %v3151
      %3232 = vst.msk [vmem:[%s280 + $0x10] sm:$0xff] %vm371, %v3152
      %3233 = vst.msk [vmem:[%s280 + $0x18] sm:$0xff] %vm371, %v3153
      %3234 = vst.msk [vmem:[%s280 + $0x20] sm:$0xff] %vm371, %v3154
      %3235 = vst.msk [vmem:[%s280 + $0x28] sm:$0xff] %vm371, %v3155
      %3236 = vst.msk [vmem:[%s280 + $0x30] sm:$0xff] %vm371, %v3156
      %3237 = vst.msk [vmem:[%s280 + $0x38] sm:$0xff] %vm371, %v3157
      %3238 = vst.msk [vmem:[%s280 + $0x40] sm:$0xff] %vm371, %v3158
      %3239 = vst.msk [vmem:[%s280 + $0x48] sm:$0xff] %vm371, %v3159
      %3240 = vst.msk [vmem:[%s280 + $0x50] sm:$0xff] %vm371, %v3160
      %3241 = vst.msk [vmem:[%s280 + $0x58] sm:$0xff] %vm371, %v3161
      %3242 = vst.msk [vmem:[%s280 + $0x60] sm:$0xff] %vm371, %v3162
      %3243 = vst.msk [vmem:[%s280 + $0x68] sm:$0xff] %vm371, %v3163
      %3244 = vst.msk [vmem:[%s280 + $0x70] sm:$0xff] %vm371, %v3164
      %3245 = vst.msk [vmem:[%s280 + $0x78] sm:$0xff] %vm371, %v3165
      %3246 = vst.msk [vmem:[%s280 + $0x80] sm:$0xff] %vm371, %v3166
      %3247 = vst.msk [vmem:[%s280 + $0x88] sm:$0xff] %vm371, %v3167
      %3248 = vst.msk [vmem:[%s280 + $0x90] sm:$0xff] %vm371, %v3168
      %3249 = vst.msk [vmem:[%s280 + $0x98] sm:$0xff] %vm371, %v3169
      %3250 = vst.msk [vmem:[%s280 + $0xa0] sm:$0xff] %vm371, %v3170
      %3251 = vst.msk [vmem:[%s280 + $0xa8] sm:$0xff] %vm371, %v3171
      %3252 = vst.msk [vmem:[%s280 + $0xb0] sm:$0xff] %vm371, %v3172
      %3253 = vst.msk [vmem:[%s280 + $0xb8] sm:$0xff] %vm371, %v3173
      %3254 = vst.msk [vmem:[%s280 + $0xc0] sm:$0xff] %vm371, %v3174
      %3255 = vst.msk [vmem:[%s280 + $0xc8] sm:$0xff] %vm371, %v3175
      %3256 = vst.msk [vmem:[%s280 + $0xd0] sm:$0xff] %vm371, %v3176
      %3257 = vst.msk [vmem:[%s280 + $0xd8] sm:$0xff] %vm371, %v3177
      %3258 = vst.msk [vmem:[%s280 + $0xe0] sm:$0xff] %vm371, %v3178
      %3259 = vst.msk [vmem:[%s280 + $0xe8] sm:$0xff] %vm371, %v3179
      %3260 = vst.msk [vmem:[%s280 + $0xf0] sm:$0xff] %vm371, %v3180
      %3261 = vst.msk [vmem:[%s280 + $0xf8] sm:$0xff] %vm371, %v3181
      %3262 = vst.msk [vmem:[%s280 + $0x100] sm:$0xff] %vm371, %v3182
      %3263 = vst.msk [vmem:[%s280 + $0x108] sm:$0xff] %vm371, %v3183
      %3264 = vst.msk [vmem:[%s280 + $0x110] sm:$0xff] %vm371, %v3184
      %3265 = vst.msk [vmem:[%s280 + $0x118] sm:$0xff] %vm371, %v3185
      %3266 = vst.msk [vmem:[%s280 + $0x120] sm:$0xff] %vm371, %v3186
      %3267 = vst.msk [vmem:[%s280 + $0x128] sm:$0xff] %vm371, %v3187
      %3268 = vst.msk [vmem:[%s280 + $0x130] sm:$0xff] %vm371, %v3188
      %3269 = vst.msk [vmem:[%s280 + $0x138] sm:$0xff] %vm371, %v3189
      %3270 = vst.msk [vmem:[%s280 + $0x140] sm:$0xff] %vm371, %v3190
      %3271 = vst.msk [vmem:[%s280 + $0x148] sm:$0xff] %vm371, %v3191
      %3272 = vst.msk [vmem:[%s280 + $0x150] sm:$0xff] %vm371, %v3192
      %3273 = vst.msk [vmem:[%s280 + $0x158] sm:$0xff] %vm371, %v3193
      %3274 = vst.msk [vmem:[%s280 + $0x160] sm:$0xff] %vm371, %v3194
      %3275 = vst.msk [vmem:[%s280 + $0x168] sm:$0xff] %vm371, %v3195
      %3276 = vst.msk [vmem:[%s280 + $0x170] sm:$0xff] %vm371, %v3196
      %3277 = vst.msk [vmem:[%s280 + $0x178] sm:$0xff] %vm371, %v3197
      %3278 = vst.msk [vmem:[%s280 + $0x180] sm:$0xff] %vm371, %v3198
      %3279 = vst.msk [vmem:[%s280 + $0x188] sm:$0xff] %vm371, %v3199
      %3280 = vst.msk [vmem:[%s280 + $0x190] sm:$0xff] %vm371, %v3200
      %3281 = vst.msk [vmem:[%s280 + $0x198] sm:$0xff] %vm371, %v3201
      %3282 = vst.msk [vmem:[%s280 + $0x1a0] sm:$0xff] %vm371, %v3202
      %3283 = vst.msk [vmem:[%s280 + $0x1a8] sm:$0xff] %vm371, %v3203
      %3284 = vst.msk [vmem:[%s280 + $0x1b0] sm:$0xff] %vm371, %v3204
      %3285 = vst.msk [vmem:[%s280 + $0x1b8] sm:$0xff] %vm371, %v3205
      %3286 = vst.msk [vmem:[%s280 + $0x1c0] sm:$0xff] %vm371, %v3206
      %3287 = vst.msk [vmem:[%s280 + $0x1c8] sm:$0xff] %vm371, %v3207
      %3288 = vst.msk [vmem:[%s280 + $0x1d0] sm:$0xff] %vm371, %v3208
      %3289 = vst.msk [vmem:[%s280 + $0x1d8] sm:$0xff] %vm371, %v3209
      %3290 = vst.msk [vmem:[%s280 + $0x1e0] sm:$0xff] %vm371, %v3210
      %3291 = vst.msk [vmem:[%s280 + $0x1e8] sm:$0xff] %vm371, %v3211
      %3292 = vst.msk [vmem:[%s280 + $0x1f0] sm:$0xff] %vm371, %v3212
      %3293 = vst.msk [vmem:[%s280 + $0x1f8] sm:$0xff] %vm371, %v3213
      %3294 = vst.msk [vmem:[%s280 + $0x200] sm:$0xff] %vm371, %v3214
      %3295 = vst.msk [vmem:[%s280 + $0x208] sm:$0xff] %vm371, %v3215
      %3296 = vst.msk [vmem:[%s280 + $0x210] sm:$0xff] %vm371, %v3216
      %3297 = vst.msk [vmem:[%s280 + $0x218] sm:$0xff] %vm371, %v3217
      %3298 = vst.msk [vmem:[%s280 + $0x220] sm:$0xff] %vm371, %v3218
      %3299 = vst.msk [vmem:[%s280 + $0x228] sm:$0xff] %vm371, %v3219
      %3300 = vst.msk [vmem:[%s280 + $0x230] sm:$0xff] %vm371, %v3220
      %3301 = vst.msk [vmem:[%s280 + $0x238] sm:$0xff] %vm371, %v3221
      %3302 = vst.msk [vmem:[%s280 + $0x240] sm:$0xff] %vm371, %v3222
      %3303 = vst.msk [vmem:[%s280 + $0x248] sm:$0xff] %vm371, %v3223
      %3304 = vst.msk [vmem:[%s280 + $0x250] sm:$0xff] %vm371, %v3224
      %3305 = vst.msk [vmem:[%s280 + $0x258] sm:$0xff] %vm371, %v3225
      %3306 = vst.msk [vmem:[%s280 + $0x260] sm:$0xff] %vm371, %v3226
      %3307 = vst.msk [vmem:[%s280 + $0x268] sm:$0xff] %vm371, %v3227
      %3308 = vst.msk [vmem:[%s280 + $0x270] sm:$0xff] %vm371, %v3228
      %3309 = vst.msk [vmem:[%s280 + $0x278] sm:$0xff] %vm371, %v3229
      %s3310 = smul.u32 80, %s18
      %p3311 = scmp.lt.s32.totalorder %s3310, 159
      %s3312 = scalar_select %p3311, %s3310, 159
      %s3313 = smul.addr %s3312, 8
      %s3314 = scalar_lea.vmem %s7, %s3313
      // Predicated region
      $region49: #{tpu_custom_call.1} parent=47 // pred_check
        %p3315 = pneg %p188
      $region50: #{tpu_custom_call.1} parent=47 // pred_check_branch
        %3317 = sbr.rel (%p3315) target = $region52
      $region51: #{tpu_custom_call.1} parent=47 // pred_region
        %s3318 = smul.u32 80, %s18
      $region52: #{tpu_custom_call.1} parent=47 // pred_fallthru
        _
    $region48: #{tpu_custom_call.1} parent=5 // pred_fallthru
      _
    %p3319 = scmp.le.s32.totalorder 2, %s13
    // Predicated region
    $region53: #{tpu_custom_call.1} parent=5 // pred_check
      %p3320 = pneg %p3319
    $region54: #{tpu_custom_call.1} parent=5 // pred_check_branch
      %3322 = sbr.rel (%p3320) target = $region56
    $region55: #{tpu_custom_call.1} parent=5 // pred_region
      %s3323 = ssub.s32 %s13, 2
      // Predicated region
      $region57: #{tpu_custom_call.1} parent=55 // pred_check
        %p3324 = pneg %p194
      $region58: #{tpu_custom_call.1} parent=55 // pred_check_branch
        %3326 = sbr.rel (%p3324) target = $region60
      $region59: #{tpu_custom_call.1} parent=55 // pred_region
        %s3327 = smul.u32 80, %s19
        %p3328 = scmp.lt.s32.totalorder %s3327, 159
        %s3329 = scalar_select %p3328, %s3327, 159
        %s3330 = smul.addr %s3329, 8
        %s3331 = scalar_lea.vmem %s7, %s3330
      $region60: #{tpu_custom_call.1} parent=55 // pred_fallthru
        _
    $region56: #{tpu_custom_call.1} parent=5 // pred_fallthru
      _
  $region6: #{tpu_custom_call.1} parent=0 // loop_footer
    %s17 = sadd.s32 1, %s13
  $region7: #{tpu_custom_call.1} parent=0 // loop_footer_branch
    %12 = sbr.rel target = $region3
  $region8: #{tpu_custom_call.1} parent=0 // loop_exit
    _

</llo_original>
